<compile_context>
chip_gen: v7x
topology: tpu7x:2x2x1
jax: 0.10.0
libtpu: 0.0.40
codegen_flags: <defaults>
</compile_context>

<pallas_src>
import math

import jax
import jax.numpy as jnp
from jax.experimental import pallas as pl
from jax.experimental.pallas import tpu as pltpu


def _round_up(n, m):
    return -(-n // m) * m


def _pad_to(a, shape):
    out = jnp.zeros(shape, a.dtype)
    return out.at[tuple(slice(0, s) for s in a.shape)].set(a)


def _diff_unet_kernel(x_ref, t_ref,
                      wt_ref, bt_ref,
                      w1x_ref, w1t_ref, b1_ref,
                      w2_ref, b2_ref,
                      w3_ref, b3_ref,
                      out_ref):
    """Fused forward: in-kernel sinusoidal embedding + time-MLP + 3-layer MLP.

    All matmuls are bf16 x bf16 on the MXU with f32 accumulation; biases,
    activations and the output stay f32.
    """
    f32 = jnp.float32
    bf16 = jnp.bfloat16
    half = wt_ref.shape[0] // 2

    # ---- SinusoidalPosEmb (EUP work, hidden under the weight DMA) -------------
    k = jax.lax.broadcasted_iota(jnp.int32, (1, half), 1).astype(f32)      # (1, half)
    freqs = jnp.exp(k * (-math.log(10000.0) / (half - 1)))                 # (1, half)
    ang = t_ref[...] * freqs                                               # (M, half)
    # half is a multiple of 128 -> lane-aligned concat, no XLU shuffles.
    sincos = jnp.concatenate([jnp.sin(ang), jnp.cos(ang)], axis=-1).astype(bf16)

    # ---- time_mlp: Linear(T, T) + ReLU (single stacked bf16 weight) ----------
    temb = jnp.dot(sincos, wt_ref[...], preferred_element_type=f32)        # (M, T)
    temb = jnp.maximum(temb + bt_ref[...], 0.0)

    # ---- net[0..1]: Linear(ch+T, 2ch) + ReLU (cat folded into split dots) ----
    h1 = jnp.dot(x_ref[...].astype(bf16), w1x_ref[...], preferred_element_type=f32)
    h1 = h1 + jnp.dot(temb.astype(bf16), w1t_ref[...], preferred_element_type=f32)
    h1 = jnp.maximum(h1 + b1_ref[...], 0.0)                                # (M, 2ch_pad)

    # ---- net[2..3]: Linear(2ch, ch) + ReLU ------------------------------------
    h2 = jnp.dot(h1.astype(bf16), w2_ref[...], preferred_element_type=f32)
    h2 = jnp.maximum(h2 + b2_ref[...], 0.0)                                # (M, ch_pad)

    # ---- net[4]: Linear(ch, ch), lane-dense padded output ---------------------
    out = jnp.dot(h2.astype(bf16), w3_ref[...], preferred_element_type=f32) + b3_ref[...]
    out_ref[...] = out.astype(out_ref.dtype)                               # (M, ch_pad)


@jax.jit
def diff_unet_forward(x, t, params):
    """DiffUNet.forward.

    x: (B, ch) or (S, B, ch); t: (B,) or (S, B).  Rows are flattened to
    M = S*B and processed in blocks of up to 256 rows per grid step while every
    weight stays VMEM-resident (constant index_map -> single HBM weight load).
    """
    squeeze = x.ndim == 2
    if squeeze:
        x = x[None]
        t = t[None]
    S, B, ch = x.shape
    T = params["wt"].shape[0]
    half = T // 2
    cp = params["w3"].shape[-1]                      # lane-padded output width

    M = S * B
    xf = x.reshape(M, ch).astype(jnp.float32)
    tf = t.reshape(M, 1).astype(jnp.float32)

    # Row-block size: >=256 rows per MXU pass when possible (v6e/v7x full fill,
    # 2x v5e's 128-row MXU), otherwise one sublane-aligned block covering M.
    TARGET = 256
    m_blk = TARGET if M >= TARGET else _round_up(M, 8)
    Mp = _round_up(M, m_blk)
    if Mp != M:
        xf = jnp.pad(xf, ((0, Mp - M), (0, 0)))
        tf = jnp.pad(tf, ((0, Mp - M), (0, 0)))

    weight_names = ("wt", "bt", "w1x", "w1t", "b1", "w2", "b2", "w3", "b3")
    weights = [params[n] for n in weight_names]

    def weight_spec(arr):
        nd = arr.ndim
        # Constant block index across the grid -> fetched once, stays resident.
        return pl.BlockSpec(arr.shape, lambda i, _nd=nd: (0,) * _nd)

    ch2p = params["w1x"].shape[-1]
    flops = 2 * Mp * (T * T + ch * ch2p + T * ch2p + ch2p * cp + cp * cp)
    bytes_accessed = (xf.nbytes + tf.nbytes
                      + sum(int(w.nbytes) for w in weights) + Mp * cp * 4)
    cost = pl.CostEstimate(flops=flops,
                           transcendentals=Mp * T + half,
                           bytes_accessed=bytes_accessed)

    out = pl.pallas_call(
        _diff_unet_kernel,
        out_shape=jax.ShapeDtypeStruct((Mp, cp), jnp.float32),
        grid=(Mp // m_blk,),
        in_specs=[pl.BlockSpec((m_blk, ch), lambda i: (i, 0)),
                  pl.BlockSpec((m_blk, 1), lambda i: (i, 0))]
                 + [weight_spec(w) for w in weights],
        out_specs=pl.BlockSpec((m_blk, cp), lambda i: (i, 0)),
        compiler_params=pltpu.CompilerParams(dimension_semantics=("parallel",)),
        cost_estimate=cost,
    )(xf, tf, *weights)

    out = out[:M, :ch].reshape(S, B, ch)             # drop row & lane padding
    if squeeze:
        out = out[0]
    return out


def init_params(key, latent_dim, time_emb_dim):
    """Synthetic init matching nn.Linear's fan-in uniform.

    Weights stored [in, out] in bfloat16 (halves HBM traffic); biases kept f32.
    The first net layer is split along its input dim (x-rows / temb-rows).  All
    hidden/output column widths (2ch, ch) are zero-padded to 128 lanes so every
    vector op in the kernel is lane-dense; padding contributes exact zeros.
    """
    ch, T = latent_dim, time_emb_dim
    ch2p = _round_up(2 * ch, 128)
    chp = _round_up(ch, 128)
    ks = jax.random.split(key, 4)
    bf16, f32 = jnp.bfloat16, jnp.float32

    def lin(k, fan_in, fan_out):
        bound = 1.0 / math.sqrt(fan_in)
        kw, kb = jax.random.split(k)
        w = jax.random.uniform(kw, (fan_in, fan_out), f32, -bound, bound)
        b = jax.random.uniform(kb, (1, fan_out), f32, -bound, bound)
        return w, b

    wt, bt = lin(ks[0], T, T)                        # time_mlp Linear(T, T)
    w1, b1 = lin(ks[1], ch + T, 2 * ch)              # net Linear(ch+T, 2ch)
    w2, b2 = lin(ks[2], 2 * ch, ch)                  # net Linear(2ch, ch)
    w3, b3 = lin(ks[3], ch, ch)                      # net Linear(ch, ch)

    return {
        "wt": wt.astype(bf16), "bt": bt,
        "w1x": _pad_to(w1[:ch], (ch, ch2p)).astype(bf16),
        "w1t": _pad_to(w1[ch:], (T, ch2p)).astype(bf16),
        "b1": _pad_to(b1, (1, ch2p)),
        "w2": _pad_to(w2, (ch2p, chp)).astype(bf16),
        "b2": _pad_to(b2, (1, chp)),
        "w3": _pad_to(w3, (chp, chp)).astype(bf16),
        "b3": _pad_to(b3, (1, chp)),
    }


def reference_forward(x, t, params, *, latent_dim, time_emb_dim):
    """Plain-JAX reference mirroring the PyTorch module (bf16 weights upcast to
    f32, f32 activations).  x: (M, ch), t: (M,)."""
    f32 = jnp.float32
    ch, T = latent_dim, time_emb_dim
    half = T // 2
    emb = math.log(10000.0) / (half - 1)
    freqs = jnp.exp(jnp.arange(half, dtype=f32) * -emb)
    ang = t.astype(f32)[:, None] * freqs[None, :]
    sincos = jnp.concatenate([jnp.sin(ang), jnp.cos(ang)], axis=-1)

    temb = jnp.maximum(sincos @ params["wt"].astype(f32) + params["bt"], 0.0)

    h = jnp.concatenate([x, temb], axis=-1)
    w1 = jnp.concatenate([params["w1x"], params["w1t"]], 0).astype(f32)[:, :2 * ch]
    h = jnp.maximum(h @ w1 + params["b1"][:, :2 * ch], 0.0)
    w2 = params["w2"].astype(f32)[:2 * ch, :ch]
    h = jnp.maximum(h @ w2 + params["b2"][:, :ch], 0.0)
    w3 = params["w3"].astype(f32)[:ch, :ch]
    return h @ w3 + params["b3"][:, :ch]


if __name__ == "__main__":
    B = 8
    LATENT_DIM = 32
    TIME_EMB_DIM = 512   # module default
    STEPS = 40           # stacked evaluations: M = 320 -> 2 row blocks (w/ padding)

    key = jax.random.PRNGKey(0)
    kx, kt, kp, ks = jax.random.split(key, 4)

    params = init_params(kp, LATENT_DIM, TIME_EMB_DIM)

    # Single forward pass (matches DiffUNet.forward).
    x = jax.random.normal(kx, (B, LATENT_DIM), dtype=jnp.float32)
    t = jax.random.randint(kt, (B,), 0, 1000).astype(jnp.float32)
    out = jax.block_until_ready(diff_unet_forward(x, t, params))
    ref = reference_forward(x, t, params,
                            latent_dim=LATENT_DIM, time_emb_dim=TIME_EMB_DIM)
    assert out.shape == (B, LATENT_DIM)
    # bf16 activations in the kernel vs f32-activation reference -> ~1e-3 level error.
    assert jnp.allclose(out, ref, atol=1e-2, rtol=1e-2), "mismatch vs reference (single)"

    # Stacked-step call: weights DMA'd once, rows blocked 256 at a time.
    kxs, kts = jax.random.split(ks)
    xs = jax.random.normal(kxs, (STEPS, B, LATENT_DIM), dtype=jnp.float32)
    ts = jax.random.randint(kts, (STEPS, B), 0, 1000).astype(jnp.float32)
    outs = jax.block_until_ready(diff_unet_forward(xs, ts, params))
    refs = reference_forward(xs.reshape(-1, LATENT_DIM), ts.reshape(-1), params,
                             latent_dim=LATENT_DIM, time_emb_dim=TIME_EMB_DIM
                             ).reshape(STEPS, B, LATENT_DIM)
    assert outs.shape == (STEPS, B, LATENT_DIM)
    assert jnp.allclose(outs, refs, atol=1e-2, rtol=1e-2), "mismatch vs reference (stacked)"

    print("KERNEL_OK")
</pallas_src>

<mosaic_0001>
module attributes {stable_mosaic.version = 11 : i64} {
  func.func @_diff_unet_kernel(%arg0: i32, %arg1: memref<8x32xf32, #tpu.memory_space<vmem>>, %arg2: memref<8x1xf32, #tpu.memory_space<vmem>>, %arg3: memref<512x512xbf16, #tpu.memory_space<vmem>>, %arg4: memref<1x512xf32, #tpu.memory_space<vmem>>, %arg5: memref<32x128xbf16, #tpu.memory_space<vmem>>, %arg6: memref<512x128xbf16, #tpu.memory_space<vmem>>, %arg7: memref<1x128xf32, #tpu.memory_space<vmem>>, %arg8: memref<128x128xbf16, #tpu.memory_space<vmem>>, %arg9: memref<1x128xf32, #tpu.memory_space<vmem>>, %arg10: memref<128x128xbf16, #tpu.memory_space<vmem>>, %arg11: memref<1x128xf32, #tpu.memory_space<vmem>>, %arg12: memref<8x128xf32, #tpu.memory_space<vmem>>) attributes {dimension_semantics = [#tpu.dimension_semantics<parallel>], iteration_bounds = array<i64: 1>, scalar_prefetch = 0 : i64, scratch_operands = 0 : i64, tpu.core_type = #tpu.core_type<tc>, window_params = [{transform_indices = @transform_0, window_bounds = array<i64: 8, 32>}, {transform_indices = @transform_1, window_bounds = array<i64: 8, 1>}, {pipeline_mode = #tpu.pipeline_mode<synchronous>, transform_indices = @transform_2, window_bounds = array<i64: 512, 512>}, {pipeline_mode = #tpu.pipeline_mode<synchronous>, transform_indices = @transform_3, window_bounds = array<i64: 1, 512>}, {pipeline_mode = #tpu.pipeline_mode<synchronous>, transform_indices = @transform_4, window_bounds = array<i64: 32, 128>}, {pipeline_mode = #tpu.pipeline_mode<synchronous>, transform_indices = @transform_5, window_bounds = array<i64: 512, 128>}, {pipeline_mode = #tpu.pipeline_mode<synchronous>, transform_indices = @transform_6, window_bounds = array<i64: 1, 128>}, {pipeline_mode = #tpu.pipeline_mode<synchronous>, transform_indices = @transform_7, window_bounds = array<i64: 128, 128>}, {pipeline_mode = #tpu.pipeline_mode<synchronous>, transform_indices = @transform_8, window_bounds = array<i64: 1, 128>}, {pipeline_mode = #tpu.pipeline_mode<synchronous>, transform_indices = @transform_9, window_bounds = array<i64: 128, 128>}, {pipeline_mode = #tpu.pipeline_mode<synchronous>, transform_indices = @transform_10, window_bounds = array<i64: 1, 128>}, {transform_indices = @transform_11, window_bounds = array<i64: 8, 128>}]} {
    %0 = tpu.iota {dimensions = array<i32: 1>} : vector<1x256xi32>
    %1 = arith.sitofp %0 : vector<1x256xi32> to vector<1x256xf32>
    %cst = arith.constant -0.0361189805 : f32
    %2 = vector.broadcast %cst : f32 to vector<1x256xf32>
    %3 = arith.mulf %1, %2 : vector<1x256xf32>
    %4 = math.exp %3 : vector<1x256xf32>
    %c0 = arith.constant 0 : index
    %c0_0 = arith.constant 0 : index
    %5 = vector.load %arg2[%c0, %c0_0] : memref<8x1xf32, #tpu.memory_space<vmem>>, vector<8x1xf32>
    %6 = vector.broadcast %5 : vector<8x1xf32> to vector<8x256xf32>
    %7 = vector.broadcast %4 : vector<1x256xf32> to vector<8x256xf32>
    %8 = arith.mulf %6, %7 : vector<8x256xf32>
    %9 = math.sin %8 : vector<8x256xf32>
    %10 = math.cos %8 : vector<8x256xf32>
    %11 = tpu.concatenate %9, %10 in 1 : vector<8x256xf32>, vector<8x256xf32> -> vector<8x512xf32>
    %12 = arith.truncf %11 : vector<8x512xf32> to vector<8x512xbf16>
    %c0_1 = arith.constant 0 : index
    %c0_2 = arith.constant 0 : index
    %13 = vector.load %arg3[%c0_1, %c0_2] : memref<512x512xbf16, #tpu.memory_space<vmem>>, vector<512x512xbf16>
    %cst_3 = arith.constant dense<0.000000e+00> : vector<8x512xf32>
    %14 = tpu.matmul %12, %13, %cst_3 {dimension_numbers = #tpu.dot_dimension_numbers<[1], [0], [0], [1], [0, 0, 1, 1], [], []>} : vector<8x512xbf16>, vector<512x512xbf16>, vector<8x512xf32> -> vector<8x512xf32>
    %c0_4 = arith.constant 0 : index
    %c0_5 = arith.constant 0 : index
    %15 = vector.load %arg4[%c0_4, %c0_5] : memref<1x512xf32, #tpu.memory_space<vmem>>, vector<1x512xf32>
    %16 = vector.broadcast %15 : vector<1x512xf32> to vector<8x512xf32>
    %17 = arith.addf %14, %16 : vector<8x512xf32>
    %cst_6 = arith.constant 0.000000e+00 : f32
    %18 = vector.broadcast %cst_6 : f32 to vector<8x512xf32>
    %19 = arith.maximumf %17, %18 : vector<8x512xf32>
    %c0_7 = arith.constant 0 : index
    %c0_8 = arith.constant 0 : index
    %20 = vector.load %arg1[%c0_7, %c0_8] : memref<8x32xf32, #tpu.memory_space<vmem>>, vector<8x32xf32>
    %21 = arith.truncf %20 : vector<8x32xf32> to vector<8x32xbf16>
    %c0_9 = arith.constant 0 : index
    %c0_10 = arith.constant 0 : index
    %22 = vector.load %arg5[%c0_9, %c0_10] : memref<32x128xbf16, #tpu.memory_space<vmem>>, vector<32x128xbf16>
    %cst_11 = arith.constant dense<0.000000e+00> : vector<8x128xf32>
    %23 = tpu.matmul %21, %22, %cst_11 {dimension_numbers = #tpu.dot_dimension_numbers<[1], [0], [0], [1], [0, 0, 1, 1], [], []>} : vector<8x32xbf16>, vector<32x128xbf16>, vector<8x128xf32> -> vector<8x128xf32>
    %24 = arith.truncf %19 : vector<8x512xf32> to vector<8x512xbf16>
    %c0_12 = arith.constant 0 : index
    %c0_13 = arith.constant 0 : index
    %25 = vector.load %arg6[%c0_12, %c0_13] : memref<512x128xbf16, #tpu.memory_space<vmem>>, vector<512x128xbf16>
    %cst_14 = arith.constant dense<0.000000e+00> : vector<8x128xf32>
    %26 = tpu.matmul %24, %25, %cst_14 {dimension_numbers = #tpu.dot_dimension_numbers<[1], [0], [0], [1], [0, 0, 1, 1], [], []>} : vector<8x512xbf16>, vector<512x128xbf16>, vector<8x128xf32> -> vector<8x128xf32>
    %27 = arith.addf %23, %26 : vector<8x128xf32>
    %c0_15 = arith.constant 0 : index
    %c0_16 = arith.constant 0 : index
    %28 = vector.load %arg7[%c0_15, %c0_16] : memref<1x128xf32, #tpu.memory_space<vmem>>, vector<1x128xf32>
    %29 = vector.broadcast %28 : vector<1x128xf32> to vector<8x128xf32>
    %30 = arith.addf %27, %29 : vector<8x128xf32>
    %cst_17 = arith.constant 0.000000e+00 : f32
    %31 = vector.broadcast %cst_17 : f32 to vector<8x128xf32>
    %32 = arith.maximumf %30, %31 : vector<8x128xf32>
    %33 = arith.truncf %32 : vector<8x128xf32> to vector<8x128xbf16>
    %c0_18 = arith.constant 0 : index
    %c0_19 = arith.constant 0 : index
    %34 = vector.load %arg8[%c0_18, %c0_19] : memref<128x128xbf16, #tpu.memory_space<vmem>>, vector<128x128xbf16>
    %cst_20 = arith.constant dense<0.000000e+00> : vector<8x128xf32>
    %35 = tpu.matmul %33, %34, %cst_20 {dimension_numbers = #tpu.dot_dimension_numbers<[1], [0], [0], [1], [0, 0, 1, 1], [], []>} : vector<8x128xbf16>, vector<128x128xbf16>, vector<8x128xf32> -> vector<8x128xf32>
    %c0_21 = arith.constant 0 : index
    %c0_22 = arith.constant 0 : index
    %36 = vector.load %arg9[%c0_21, %c0_22] : memref<1x128xf32, #tpu.memory_space<vmem>>, vector<1x128xf32>
    %37 = vector.broadcast %36 : vector<1x128xf32> to vector<8x128xf32>
    %38 = arith.addf %35, %37 : vector<8x128xf32>
    %cst_23 = arith.constant 0.000000e+00 : f32
    %39 = vector.broadcast %cst_23 : f32 to vector<8x128xf32>
    %40 = arith.maximumf %38, %39 : vector<8x128xf32>
    %41 = arith.truncf %40 : vector<8x128xf32> to vector<8x128xbf16>
    %c0_24 = arith.constant 0 : index
    %c0_25 = arith.constant 0 : index
    %42 = vector.load %arg10[%c0_24, %c0_25] : memref<128x128xbf16, #tpu.memory_space<vmem>>, vector<128x128xbf16>
    %cst_26 = arith.constant dense<0.000000e+00> : vector<8x128xf32>
    %43 = tpu.matmul %41, %42, %cst_26 {dimension_numbers = #tpu.dot_dimension_numbers<[1], [0], [0], [1], [0, 0, 1, 1], [], []>} : vector<8x128xbf16>, vector<128x128xbf16>, vector<8x128xf32> -> vector<8x128xf32>
    %c0_27 = arith.constant 0 : index
    %c0_28 = arith.constant 0 : index
    %44 = vector.load %arg11[%c0_27, %c0_28] : memref<1x128xf32, #tpu.memory_space<vmem>>, vector<1x128xf32>
    %45 = vector.broadcast %44 : vector<1x128xf32> to vector<8x128xf32>
    %46 = arith.addf %43, %45 : vector<8x128xf32>
    %c0_29 = arith.constant 0 : index
    %c0_30 = arith.constant 0 : index
    %47 = vector.load %arg12[%c0_29, %c0_30] : memref<8x128xf32, #tpu.memory_space<vmem>>, vector<8x128xf32>
    tpu.vector_store %arg12[%c0_29, %c0_30], %46 {strides = array<i32>} : memref<8x128xf32, #tpu.memory_space<vmem>>, vector<8x128xf32>,
    return
  }
  func.func @transform_0(%arg0: i32) -> (i32, i32) {
    %c0_i32 = arith.constant 0 : i32
    %c0_i32_0 = arith.constant 0 : i32
    return %arg0, %c0_i32 : i32, i32
  }
  func.func @transform_1(%arg0: i32) -> (i32, i32) {
    %c0_i32 = arith.constant 0 : i32
    %c0_i32_0 = arith.constant 0 : i32
    return %arg0, %c0_i32 : i32, i32
  }
  func.func @transform_2(%arg0: i32) -> (i32, i32) {
    %c0_i32 = arith.constant 0 : i32
    %c0_i32_0 = arith.constant 0 : i32
    %c0_i32_1 = arith.constant 0 : i32
    return %c0_i32, %c0_i32_0 : i32, i32
  }
  func.func @transform_3(%arg0: i32) -> (i32, i32) {
    %c0_i32 = arith.constant 0 : i32
    %c0_i32_0 = arith.constant 0 : i32
    %c0_i32_1 = arith.constant 0 : i32
    return %c0_i32, %c0_i32_0 : i32, i32
  }
  func.func @transform_4(%arg0: i32) -> (i32, i32) {
    %c0_i32 = arith.constant 0 : i32
    %c0_i32_0 = arith.constant 0 : i32
    %c0_i32_1 = arith.constant 0 : i32
    return %c0_i32, %c0_i32_0 : i32, i32
  }
  func.func @transform_5(%arg0: i32) -> (i32, i32) {
    %c0_i32 = arith.constant 0 : i32
    %c0_i32_0 = arith.constant 0 : i32
    %c0_i32_1 = arith.constant 0 : i32
    return %c0_i32, %c0_i32_0 : i32, i32
  }
  func.func @transform_6(%arg0: i32) -> (i32, i32) {
    %c0_i32 = arith.constant 0 : i32
    %c0_i32_0 = arith.constant 0 : i32
    %c0_i32_1 = arith.constant 0 : i32
    return %c0_i32, %c0_i32_0 : i32, i32
  }
  func.func @transform_7(%arg0: i32) -> (i32, i32) {
    %c0_i32 = arith.constant 0 : i32
    %c0_i32_0 = arith.constant 0 : i32
    %c0_i32_1 = arith.constant 0 : i32
    return %c0_i32, %c0_i32_0 : i32, i32
  }
  func.func @transform_8(%arg0: i32) -> (i32, i32) {
    %c0_i32 = arith.constant 0 : i32
    %c0_i32_0 = arith.constant 0 : i32
    %c0_i32_1 = arith.constant 0 : i32
    return %c0_i32, %c0_i32_0 : i32, i32
  }
  func.func @transform_9(%arg0: i32) -> (i32, i32) {
    %c0_i32 = arith.constant 0 : i32
    %c0_i32_0 = arith.constant 0 : i32
    %c0_i32_1 = arith.constant 0 : i32
    return %c0_i32, %c0_i32_0 : i32, i32
  }
  func.func @transform_10(%arg0: i32) -> (i32, i32) {
    %c0_i32 = arith.constant 0 : i32
    %c0_i32_0 = arith.constant 0 : i32
    %c0_i32_1 = arith.constant 0 : i32
    return %c0_i32, %c0_i32_0 : i32, i32
  }
  func.func @transform_11(%arg0: i32) -> (i32, i32) {
    %c0_i32 = arith.constant 0 : i32
    %c0_i32_0 = arith.constant 0 : i32
    return %arg0, %c0_i32 : i32, i32
  }
}

</mosaic_0001>

<llo_original>
// kernel: diff_unet_forward.1
$region0: #{diff_unet_forward.1}
  #allocation0 [shape = 'u32[]', space=smem, size = 0x4, offset = 0x4, fixed_abs, tag = 'smem constant byte address 0x4 - core index']
  #allocation1 [shape = 'u32[144,128]{1,0:T(1,128)}', space=vmem, size = 0x12000, scoped, tag = 'internal scratch']
  %s0 = inlined_call_operand.vmem [shape: f32[8,32], index: 0, kind: input, shape index: {}]
  %s1 = inlined_call_operand.vmem [shape: f32[8,1], index: 1, kind: input, shape index: {}]
  %s2 = inlined_call_operand.hbm [shape: bf16[512,512], index: 2, kind: input, shape index: {}]
  %s3 = inlined_call_operand.vmem [shape: f32[1,512], index: 3, kind: input, shape index: {}]
  %s4 = inlined_call_operand.vmem [shape: bf16[32,128], index: 4, kind: input, shape index: {}]
  %s5 = inlined_call_operand.hbm [shape: bf16[512,128], index: 5, kind: input, shape index: {}]
  %s6 = inlined_call_operand.vmem [shape: f32[1,128], index: 6, kind: input, shape index: {}]
  %s7 = inlined_call_operand.hbm [shape: bf16[128,128], index: 7, kind: input, shape index: {}]
  %s8 = inlined_call_operand.vmem [shape: f32[1,128], index: 8, kind: input, shape index: {}]
  %s9 = inlined_call_operand.hbm [shape: bf16[128,128], index: 9, kind: input, shape index: {}]
  %s10 = inlined_call_operand.vmem [shape: f32[1,128], index: 10, kind: input, shape index: {}]
  %s11 = inlined_call_operand.hbm [shape: f32[8,128], index: 11, kind: output, shape index: {}]
  %s12 = sld [smem:[#allocation0]]
  $region70: #{diff_unet_forward.1} parent=0
    _
  %s14 = ssub.s32 1, %s12
  %s15 = scalar_select 0, %s14, %s12
  $region1: #{diff_unet_forward.1} parent=0
    #allocation2 [shape = 'u8[524288]{0}', space=vmem, size = 0x80000, scoped, tag = 'input window, operand 2, single buffered']
    #allocation3 [shape = 's32[1]{0}', space=sflag, size = 0x4, scoped, tag = 'scoped memory for diff_unet_forward.1']
    #allocation4 [shape = 's32[1]{0}', space=sflag, size = 0x4, scoped, tag = 'scoped memory for diff_unet_forward.1']
    #allocation5 [shape = 'u8[131072]{0}', space=vmem, size = 0x20000, scoped, tag = 'input window, operand 5, single buffered']
    #allocation6 [shape = 's32[1]{0}', space=sflag, size = 0x4, scoped, tag = 'scoped memory for diff_unet_forward.1']
    #allocation7 [shape = 'u8[32768]{0}', space=vmem, size = 0x8000, scoped, tag = 'input window, operand 7, single buffered']
    #allocation8 [shape = 'u8[32768]{0}', space=vmem, size = 0x8000, scoped, tag = 'input window, operand 9, single buffered']
    #allocation9 [shape = 's32[1]{0}', space=sflag, size = 0x4, scoped, tag = 'scoped memory for diff_unet_forward.1']
    #allocation10 [shape = 'u8[4096]{0}', space=vmem, size = 0x1000, scoped, tag = 'output window, operand 0, single buffered']
    %16 = vsyncpa [#allocation3], 0
    %17 = vsyncpa [#allocation6], 0
    %18 = vsyncpa [#allocation9], 0
    %19 = vsyncpa [#allocation4], 0
    // Predicated region
    $region2: #{diff_unet_forward.1} parent=1 // pred_check
      _
    $region3: #{diff_unet_forward.1} parent=1 // pred_check_branch
      %21 = sbr.rel (0) target = $region5
    $region4: #{diff_unet_forward.1} parent=1 // pred_region
      _
    $region5: #{diff_unet_forward.1} parent=1 // pred_fallthru
      _
    // Predicated region
    $region6: #{diff_unet_forward.1} parent=1 // pred_check
      _
    $region7: #{diff_unet_forward.1} parent=1 // pred_check_branch
      %23 = sbr.rel (0) target = $region9
    $region8: #{diff_unet_forward.1} parent=1 // pred_region
      _
    $region9: #{diff_unet_forward.1} parent=1 // pred_fallthru
      _
    // Predicated region
    $region10: #{diff_unet_forward.1} parent=1 // pred_check
      _
    $region11: #{diff_unet_forward.1} parent=1 // pred_check_branch
      %25 = sbr.rel (0) target = $region13
    $region12: #{diff_unet_forward.1} parent=1 // pred_region
      %s27 = ssub.s32 16384, 16384
      %28 = vsyncadd [#allocation3], %s27
      %s29 = sshll.u32 [#allocation2], 4
      %s30 = int_to_ptr.vmem [resolvable:$true] %s29
      %35 = dma.hbm_to_vmem [thread:$0]  %s2, 16384, %s30, [#allocation3], 256, 256, 16
    $region13: #{diff_unet_forward.1} parent=1 // pred_fallthru
      _
    // Predicated region
    $region14: #{diff_unet_forward.1} parent=1 // pred_check
      _
    $region15: #{diff_unet_forward.1} parent=1 // pred_check_branch
      %37 = sbr.rel (0) target = $region17
    $region16: #{diff_unet_forward.1} parent=1 // pred_region
      _
    $region17: #{diff_unet_forward.1} parent=1 // pred_fallthru
      _
    // Predicated region
    $region18: #{diff_unet_forward.1} parent=1 // pred_check
      _
    $region19: #{diff_unet_forward.1} parent=1 // pred_check_branch
      %39 = sbr.rel (0) target = $region21
    $region20: #{diff_unet_forward.1} parent=1 // pred_region
      _
    $region21: #{diff_unet_forward.1} parent=1 // pred_fallthru
      _
    // Predicated region
    $region22: #{diff_unet_forward.1} parent=1 // pred_check
      _
    $region23: #{diff_unet_forward.1} parent=1 // pred_check_branch
      %41 = sbr.rel (0) target = $region25
    $region24: #{diff_unet_forward.1} parent=1 // pred_region
      %s43 = ssub.s32 4096, 4096
      %44 = vsyncadd [#allocation6], %s43
      %s45 = sshll.u32 [#allocation5], 4
      %s46 = int_to_ptr.vmem [resolvable:$true] %s45
      %51 = dma.hbm_to_vmem [thread:$0]  %s5, 4096, %s46, [#allocation6], 64, 64, 4
    $region25: #{diff_unet_forward.1} parent=1 // pred_fallthru
      _
    // Predicated region
    $region26: #{diff_unet_forward.1} parent=1 // pred_check
      _
    $region27: #{diff_unet_forward.1} parent=1 // pred_check_branch
      %53 = sbr.rel (0) target = $region29
    $region28: #{diff_unet_forward.1} parent=1 // pred_region
      _
    $region29: #{diff_unet_forward.1} parent=1 // pred_fallthru
      _
    // Predicated region
    $region30: #{diff_unet_forward.1} parent=1 // pred_check
      _
    $region31: #{diff_unet_forward.1} parent=1 // pred_check_branch
      %55 = sbr.rel (0) target = $region33
    $region32: #{diff_unet_forward.1} parent=1 // pred_region
      %s57 = ssub.s32 1024, 1024
      %58 = vsyncadd [#allocation6], %s57
      %s59 = sshll.u32 [#allocation7], 4
      %s60 = int_to_ptr.vmem [resolvable:$true] %s59
      %65 = dma.hbm_to_vmem [thread:$0]  %s7, 1024, %s60, [#allocation6], 64, 64, 4
    $region33: #{diff_unet_forward.1} parent=1 // pred_fallthru
      _
    // Predicated region
    $region34: #{diff_unet_forward.1} parent=1 // pred_check
      _
    $region35: #{diff_unet_forward.1} parent=1 // pred_check_branch
      %67 = sbr.rel (0) target = $region37
    $region36: #{diff_unet_forward.1} parent=1 // pred_region
      _
    $region37: #{diff_unet_forward.1} parent=1 // pred_fallthru
      _
    // Predicated region
    $region38: #{diff_unet_forward.1} parent=1 // pred_check
      _
    $region39: #{diff_unet_forward.1} parent=1 // pred_check_branch
      %69 = sbr.rel (0) target = $region41
    $region40: #{diff_unet_forward.1} parent=1 // pred_region
      %s71 = ssub.s32 1024, 1024
      %72 = vsyncadd [#allocation9], %s71
      %s73 = sshll.u32 [#allocation8], 4
      %s74 = int_to_ptr.vmem [resolvable:$true] %s73
      %79 = dma.hbm_to_vmem [thread:$0]  %s9, 1024, %s74, [#allocation9], 64, 64, 4
    $region41: #{diff_unet_forward.1} parent=1 // pred_fallthru
      _
    // Predicated region
    $region42: #{diff_unet_forward.1} parent=1 // pred_check
      _
    $region43: #{diff_unet_forward.1} parent=1 // pred_check_branch
      %81 = sbr.rel (0) target = $region45
    $region44: #{diff_unet_forward.1} parent=1 // pred_region
      _
    $region45: #{diff_unet_forward.1} parent=1 // pred_fallthru
      _
    // Predicated region
    $region46: #{diff_unet_forward.1} parent=1 // pred_check
      _
    $region47: #{diff_unet_forward.1} parent=1 // pred_check_branch
      %83 = sbr.rel (0) target = $region49
    $region48: #{diff_unet_forward.1} parent=1 // pred_region
      %84 = dma.done [#allocation3], 16384
    $region49: #{diff_unet_forward.1} parent=1 // pred_fallthru
      _
    // Predicated region
    $region50: #{diff_unet_forward.1} parent=1 // pred_check
      _
    $region51: #{diff_unet_forward.1} parent=1 // pred_check_branch
      %86 = sbr.rel (0) target = $region53
    $region52: #{diff_unet_forward.1} parent=1 // pred_region
      %87 = dma.done [#allocation6], 4096
    $region53: #{diff_unet_forward.1} parent=1 // pred_fallthru
      _
    // Predicated region
    $region54: #{diff_unet_forward.1} parent=1 // pred_check
      _
    $region55: #{diff_unet_forward.1} parent=1 // pred_check_branch
      %89 = sbr.rel (0) target = $region57
    $region56: #{diff_unet_forward.1} parent=1 // pred_region
      %90 = dma.done [#allocation6], 1024
    $region57: #{diff_unet_forward.1} parent=1 // pred_fallthru
      _
    // Predicated region
    $region58: #{diff_unet_forward.1} parent=1 // pred_check
      _
    $region59: #{diff_unet_forward.1} parent=1 // pred_check_branch
      %92 = sbr.rel (0) target = $region61
    $region60: #{diff_unet_forward.1} parent=1 // pred_region
      %93 = dma.done [#allocation9], 1024
    $region61: #{diff_unet_forward.1} parent=1 // pred_fallthru
      _
    %v95 = vlaneseq
    %v96 = vand.u32 %v95, 127
    %v97 = vadd.s32 %v96, 128
    %v98 = vcvt.s32.f32 %v96
    %v99 = vcvt.s32.f32 %v97
    %v100 = vmul.f32 %v98, -0.03611898
    %v101 = vmul.f32 %v99, -0.03611898
    %v102 = vmul.f32 %v100, 1.442695
    %v103 = vpow.pop %v102
    %v104 = vmul.f32 %v101, 1.442695
    %v105 = vpow.pop %v104
    %v106 = vld [vmem:[%s1] sm:$0xff]
    %108 = vset.pattern.permute.xlu0 0
    %109 = vperm.xlu0 %108, %v106
    %v110 = vpop.permute.xlu0 %109
    %v112 = vmul.f32 %v110, %v103
    %v113 = vmul.f32 %v110, %v105
    %v114 = vand.u32 2147483647, %v112
    %vm115 = vcmp.le.f32.partialorder %v114, 0.7853982
    %vm116 = vcmp.lt.s32.totalorder %v112, 0
    %v117 = vand.u32 %v112, 2139095040
    %v118 = vshrl.u32 %v117, 23
    %v119 = vsub.s32 %v118, 127
    %v120 = vand.u32 2147483647, %v112
    %v121 = vand.u32 %v120, 8388607
    %v122 = vor.u32 %v121, 8388608
    %v123 = vsub.s32 0, %v122
    %v124 = vadd.s32 %v119, 1
    %vm125 = vcmp.gt.s32.totalorder %v124, 0
    %v126 = vsel %vm125, %v124, 0
    %v127 = vshrl.u32 %v126, 5
    %v128 = vand.u32 %v126, 31
    %v129 = vsub.s32 32, %v128
    %v130 = vshrl.u32 683565275, %v129
    %v131 = vshll.u32 683565275, %v128
    %v132 = vshrl.u32 2475754826, %v129
    %v133 = vor.u32 %v131, %v132
    %v134 = vshll.u32 2475754826, %v128
    %v135 = vshrl.u32 2131351028, %v129
    %v136 = vor.u32 %v134, %v135
    %v137 = vshll.u32 2131351028, %v128
    %v138 = vshrl.u32 2102212464, %v129
    %v139 = vor.u32 %v137, %v138
    %v140 = vshll.u32 2102212464, %v128
    %v141 = vshrl.u32 920167782, %v129
    %v142 = vor.u32 %v140, %v141
    %v143 = vshll.u32 920167782, %v128
    %v144 = vshrl.u32 1326507024, %v129
    %v145 = vor.u32 %v143, %v144
    %vm146 = vcmp.lt.s32.totalorder %v127, 1
    %vm147 = vcmp.lt.s32.totalorder %v127, 2
    %vm148 = vcmp.lt.s32.totalorder %v127, 3
    %vm149 = vcmp.lt.s32.totalorder %v127, 4
    %v150 = vsel %vm146, %v130, %v133
    %v151 = vsel %vm149, %v139, 2102212464
    %v152 = vsel %vm148, %v136, %v151
    %v153 = vsel %vm147, %v150, %v152
    %v154 = vsel %vm146, %v133, %v136
    %v155 = vsel %vm149, %v142, 920167782
    %v156 = vsel %vm148, %v139, %v155
    %v157 = vsel %vm147, %v154, %v156
    %v158 = vsel %vm146, %v136, %v139
    %v159 = vsel %vm149, %v145, 1326507024
    %v160 = vsel %vm148, %v142, %v159
    %v161 = vsel %vm147, %v158, %v160
    %v162 = vshll.u32 %v122, 8
    %v163 = vmul.u32.u64.compose %v162, %v161
    %v164 = vextract.low.u32 %v163
    %v165 = vextract.high.u32 %v163
    %v166 = vmul.u32.u64.compose %v162, %v157
    %v167 = vextract.low.u32 %v166
    %v168 = vextract.high.u32 %v166
    %v169 = vmul.u32 %v162, %v153
    %v170 = vadd.s32 %v165, %v167
    %vm171 = vc.u32 %v165, %v167
    %v172 = vadd.s32 %v168, 1
    %v173 = vsel %vm171, %v172, %v168
    %v174 = vadd.s32 %v169, %v173
    %v175 = vadd.s32 %v174, 536870912
    %v176 = vshrl.u32 %v175, 30
    %v177 = vshll.u32 %v176, 30
    %v178 = vsub.s32 %v174, %v177
    %vm179 = vcmp.lt.s32.totalorder %v178, 0
    %v180 = vsub.s32 0, %v178
    %v181 = vsel %vm179, %v180, %v178
    %v182 = vclz %v181
    %v183 = vsub.s32 %v182, 2
    %vm184 = vcmp.gt.s32.totalorder 0, %v183
    %v185 = vsel %vm184, 0, %v183
    %v186 = vsub.s32 32, %v185
    %v187 = vshll.u32 %v178, %v185
    %v188 = vshrl.u32 %v170, %v186
    %v189 = vor.u32 %v187, %v188
    %v190 = vsub.s32 4294967266, %v185
    %v191 = vadd.s32 %v190, 127
    %v192 = vshll.u32 %v191, 23
    %v193 = vor.u32 4788187, %v192
    %v194 = vand.u32 2147483647, %v193
    %v196 = vcvt.s32.f32 %v189
    %v197 = vmul.f32 %v196, %v194
    %v198 = vxor.u32 %v197, 2147483648
    %v199 = vsel %vm116, %v198, %v197
    %v200 = vsub.s32 4, %v176
    %v201 = vsel %vm116, %v200, %v176
    %v202 = vsel %vm115, %v112, %v199
    %v203 = vsel %vm115, 0, %v201
    %v204 = vcosq.f32.pop %v202
    %v205 = vsinq.f32.pop %v202
    %vm206 = vweird.f32 %v112
    %v207 = vadd.s32 %v203, 3
    %v208 = vand.u32 %v207, 3
    %vm209 = vcmp.lt.s32.totalorder %v208, 2
    %vm210 = vcmp.eq.s32.totalorder %v208, 0
    %v211 = vxor.u32 %v205, 2147483648
    %v212 = vsel %vm210, %v204, %v211
    %vm213 = vcmp.eq.s32.totalorder %v208, 2
    %v214 = vxor.u32 %v204, 2147483648
    %v215 = vsel %vm213, %v214, %v205
    %v216 = vsel %vm209, %v212, %v215
    %v217 = vsel %vm206, nan, %v216
    %v218 = vand.u32 2147483647, %v113
    %vm219 = vcmp.le.f32.partialorder %v218, 0.7853982
    %vm220 = vcmp.lt.s32.totalorder %v113, 0
    %v221 = vand.u32 %v113, 2139095040
    %v222 = vshrl.u32 %v221, 23
    %v223 = vsub.s32 %v222, 127
    %v224 = vand.u32 2147483647, %v113
    %v225 = vand.u32 %v224, 8388607
    %v226 = vor.u32 %v225, 8388608
    %v227 = vsub.s32 0, %v226
    %v228 = vadd.s32 %v223, 1
    %vm229 = vcmp.gt.s32.totalorder %v228, 0
    %v230 = vsel %vm229, %v228, 0
    %v231 = vshrl.u32 %v230, 5
    %v232 = vand.u32 %v230, 31
    %v233 = vsub.s32 32, %v232
    %v234 = vshrl.u32 683565275, %v233
    %v235 = vshll.u32 683565275, %v232
    %v236 = vshrl.u32 2475754826, %v233
    %v237 = vor.u32 %v235, %v236
    %v238 = vshll.u32 2475754826, %v232
    %v239 = vshrl.u32 2131351028, %v233
    %v240 = vor.u32 %v238, %v239
    %v241 = vshll.u32 2131351028, %v232
    %v242 = vshrl.u32 2102212464, %v233
    %v243 = vor.u32 %v241, %v242
    %v244 = vshll.u32 2102212464, %v232
    %v245 = vshrl.u32 920167782, %v233
    %v246 = vor.u32 %v244, %v245
    %v247 = vshll.u32 920167782, %v232
    %v248 = vshrl.u32 1326507024, %v233
    %v249 = vor.u32 %v247, %v248
    %vm250 = vcmp.lt.s32.totalorder %v231, 1
    %vm251 = vcmp.lt.s32.totalorder %v231, 2
    %vm252 = vcmp.lt.s32.totalorder %v231, 3
    %vm253 = vcmp.lt.s32.totalorder %v231, 4
    %v254 = vsel %vm250, %v234, %v237
    %v255 = vsel %vm253, %v243, 2102212464
    %v256 = vsel %vm252, %v240, %v255
    %v257 = vsel %vm251, %v254, %v256
    %v258 = vsel %vm250, %v237, %v240
    %v259 = vsel %vm253, %v246, 920167782
    %v260 = vsel %vm252, %v243, %v259
    %v261 = vsel %vm251, %v258, %v260
    %v262 = vsel %vm250, %v240, %v243
    %v263 = vsel %vm253, %v249, 1326507024
    %v264 = vsel %vm252, %v246, %v263
    %v265 = vsel %vm251, %v262, %v264
    %v266 = vshll.u32 %v226, 8
    %v267 = vmul.u32.u64.compose %v266, %v265
    %v268 = vextract.low.u32 %v267
    %v269 = vextract.high.u32 %v267
    %v270 = vmul.u32.u64.compose %v266, %v261
    %v271 = vextract.low.u32 %v270
    %v272 = vextract.high.u32 %v270
    %v273 = vmul.u32 %v266, %v257
    %v274 = vadd.s32 %v269, %v271
    %vm275 = vc.u32 %v269, %v271
    %v276 = vadd.s32 %v272, 1
    %v277 = vsel %vm275, %v276, %v272
    %v278 = vadd.s32 %v273, %v277
    %v279 = vadd.s32 %v278, 536870912
    %v280 = vshrl.u32 %v279, 30
    %v281 = vshll.u32 %v280, 30
    %v282 = vsub.s32 %v278, %v281
    %vm283 = vcmp.lt.s32.totalorder %v282, 0
    %v284 = vsub.s32 0, %v282
    %v285 = vsel %vm283, %v284, %v282
    %v286 = vclz %v285
    %v287 = vsub.s32 %v286, 2
    %vm288 = vcmp.gt.s32.totalorder 0, %v287
    %v289 = vsel %vm288, 0, %v287
    %v290 = vsub.s32 32, %v289
    %v291 = vshll.u32 %v282, %v289
    %v292 = vshrl.u32 %v274, %v290
    %v293 = vor.u32 %v291, %v292
    %v294 = vsub.s32 4294967266, %v289
    %v295 = vadd.s32 %v294, 127
    %v296 = vshll.u32 %v295, 23
    %v297 = vor.u32 4788187, %v296
    %v298 = vand.u32 2147483647, %v297
    %v300 = vcvt.s32.f32 %v293
    %v301 = vmul.f32 %v300, %v298
    %v302 = vxor.u32 %v301, 2147483648
    %v303 = vsel %vm220, %v302, %v301
    %v304 = vsub.s32 4, %v280
    %v305 = vsel %vm220, %v304, %v280
    %v306 = vsel %vm219, %v113, %v303
    %v307 = vsel %vm219, 0, %v305
    %v308 = vcosq.f32.pop %v306
    %v309 = vsinq.f32.pop %v306
    %vm310 = vweird.f32 %v113
    %v311 = vadd.s32 %v307, 3
    %v312 = vand.u32 %v311, 3
    %vm313 = vcmp.lt.s32.totalorder %v312, 2
    %vm314 = vcmp.eq.s32.totalorder %v312, 0
    %v315 = vxor.u32 %v309, 2147483648
    %v316 = vsel %vm314, %v308, %v315
    %vm317 = vcmp.eq.s32.totalorder %v312, 2
    %v318 = vxor.u32 %v308, 2147483648
    %v319 = vsel %vm317, %v318, %v309
    %v320 = vsel %vm313, %v316, %v319
    %v321 = vsel %vm310, nan, %v320
    %v322 = vand.u32 2147483647, %v112
    %vm323 = vcmp.le.f32.partialorder %v322, 0.7853982
    %vm324 = vcmp.lt.s32.totalorder %v112, 0
    %v325 = vand.u32 %v112, 2139095040
    %v326 = vshrl.u32 %v325, 23
    %v327 = vsub.s32 %v326, 127
    %v328 = vand.u32 2147483647, %v112
    %v329 = vand.u32 %v328, 8388607
    %v330 = vor.u32 %v329, 8388608
    %v331 = vsub.s32 0, %v330
    %v332 = vadd.s32 %v327, 1
    %vm333 = vcmp.gt.s32.totalorder %v332, 0
    %v334 = vsel %vm333, %v332, 0
    %v335 = vshrl.u32 %v334, 5
    %v336 = vand.u32 %v334, 31
    %v337 = vsub.s32 32, %v336
    %v338 = vshrl.u32 683565275, %v337
    %v339 = vshll.u32 683565275, %v336
    %v340 = vshrl.u32 2475754826, %v337
    %v341 = vor.u32 %v339, %v340
    %v342 = vshll.u32 2475754826, %v336
    %v343 = vshrl.u32 2131351028, %v337
    %v344 = vor.u32 %v342, %v343
    %v345 = vshll.u32 2131351028, %v336
    %v346 = vshrl.u32 2102212464, %v337
    %v347 = vor.u32 %v345, %v346
    %v348 = vshll.u32 2102212464, %v336
    %v349 = vshrl.u32 920167782, %v337
    %v350 = vor.u32 %v348, %v349
    %v351 = vshll.u32 920167782, %v336
    %v352 = vshrl.u32 1326507024, %v337
    %v353 = vor.u32 %v351, %v352
    %vm354 = vcmp.lt.s32.totalorder %v335, 1
    %vm355 = vcmp.lt.s32.totalorder %v335, 2
    %vm356 = vcmp.lt.s32.totalorder %v335, 3
    %vm357 = vcmp.lt.s32.totalorder %v335, 4
    %v358 = vsel %vm354, %v338, %v341
    %v359 = vsel %vm357, %v347, 2102212464
    %v360 = vsel %vm356, %v344, %v359
    %v361 = vsel %vm355, %v358, %v360
    %v362 = vsel %vm354, %v341, %v344
    %v363 = vsel %vm357, %v350, 920167782
    %v364 = vsel %vm356, %v347, %v363
    %v365 = vsel %vm355, %v362, %v364
    %v366 = vsel %vm354, %v344, %v347
    %v367 = vsel %vm357, %v353, 1326507024
    %v368 = vsel %vm356, %v350, %v367
    %v369 = vsel %vm355, %v366, %v368
    %v370 = vshll.u32 %v330, 8
    %v371 = vmul.u32.u64.compose %v370, %v369
    %v372 = vextract.low.u32 %v371
    %v373 = vextract.high.u32 %v371
    %v374 = vmul.u32.u64.compose %v370, %v365
    %v375 = vextract.low.u32 %v374
    %v376 = vextract.high.u32 %v374
    %v377 = vmul.u32 %v370, %v361
    %v378 = vadd.s32 %v373, %v375
    %vm379 = vc.u32 %v373, %v375
    %v380 = vadd.s32 %v376, 1
    %v381 = vsel %vm379, %v380, %v376
    %v382 = vadd.s32 %v377, %v381
    %v383 = vadd.s32 %v382, 536870912
    %v384 = vshrl.u32 %v383, 30
    %v385 = vshll.u32 %v384, 30
    %v386 = vsub.s32 %v382, %v385
    %vm387 = vcmp.lt.s32.totalorder %v386, 0
    %v388 = vsub.s32 0, %v386
    %v389 = vsel %vm387, %v388, %v386
    %v390 = vclz %v389
    %v391 = vsub.s32 %v390, 2
    %vm392 = vcmp.gt.s32.totalorder 0, %v391
    %v393 = vsel %vm392, 0, %v391
    %v394 = vsub.s32 32, %v393
    %v395 = vshll.u32 %v386, %v393
    %v396 = vshrl.u32 %v378, %v394
    %v397 = vor.u32 %v395, %v396
    %v398 = vsub.s32 4294967266, %v393
    %v399 = vadd.s32 %v398, 127
    %v400 = vshll.u32 %v399, 23
    %v401 = vor.u32 4788187, %v400
    %v402 = vand.u32 2147483647, %v401
    %v404 = vcvt.s32.f32 %v397
    %v405 = vmul.f32 %v404, %v402
    %v406 = vxor.u32 %v405, 2147483648
    %v407 = vsel %vm324, %v406, %v405
    %v408 = vsub.s32 4, %v384
    %v409 = vsel %vm324, %v408, %v384
    %v410 = vsel %vm323, %v112, %v407
    %v411 = vsel %vm323, 0, %v409
    %v412 = vcosq.f32.pop %v410
    %v413 = vsinq.f32.pop %v410
    %vm414 = vweird.f32 %v112
    %v415 = vand.u32 %v411, 3
    %vm416 = vcmp.lt.s32.totalorder %v415, 2
    %vm417 = vcmp.eq.s32.totalorder %v415, 0
    %v418 = vxor.u32 %v413, 2147483648
    %v419 = vsel %vm417, %v412, %v418
    %vm420 = vcmp.eq.s32.totalorder %v415, 2
    %v421 = vxor.u32 %v412, 2147483648
    %v422 = vsel %vm420, %v421, %v413
    %v423 = vsel %vm416, %v419, %v422
    %v424 = vsel %vm414, nan, %v423
    %v425 = vand.u32 2147483647, %v113
    %vm426 = vcmp.le.f32.partialorder %v425, 0.7853982
    %vm427 = vcmp.lt.s32.totalorder %v113, 0
    %v428 = vand.u32 %v113, 2139095040
    %v429 = vshrl.u32 %v428, 23
    %v430 = vsub.s32 %v429, 127
    %v431 = vand.u32 2147483647, %v113
    %v432 = vand.u32 %v431, 8388607
    %v433 = vor.u32 %v432, 8388608
    %v434 = vsub.s32 0, %v433
    %v435 = vadd.s32 %v430, 1
    %vm436 = vcmp.gt.s32.totalorder %v435, 0
    %v437 = vsel %vm436, %v435, 0
    %v438 = vshrl.u32 %v437, 5
    %v439 = vand.u32 %v437, 31
    %v440 = vsub.s32 32, %v439
    %v441 = vshrl.u32 683565275, %v440
    %v442 = vshll.u32 683565275, %v439
    %v443 = vshrl.u32 2475754826, %v440
    %v444 = vor.u32 %v442, %v443
    %v445 = vshll.u32 2475754826, %v439
    %v446 = vshrl.u32 2131351028, %v440
    %v447 = vor.u32 %v445, %v446
    %v448 = vshll.u32 2131351028, %v439
    %v449 = vshrl.u32 2102212464, %v440
    %v450 = vor.u32 %v448, %v449
    %v451 = vshll.u32 2102212464, %v439
    %v452 = vshrl.u32 920167782, %v440
    %v453 = vor.u32 %v451, %v452
    %v454 = vshll.u32 920167782, %v439
    %v455 = vshrl.u32 1326507024, %v440
    %v456 = vor.u32 %v454, %v455
    %vm457 = vcmp.lt.s32.totalorder %v438, 1
    %vm458 = vcmp.lt.s32.totalorder %v438, 2
    %vm459 = vcmp.lt.s32.totalorder %v438, 3
    %vm460 = vcmp.lt.s32.totalorder %v438, 4
    %v461 = vsel %vm457, %v441, %v444
    %v462 = vsel %vm460, %v450, 2102212464
    %v463 = vsel %vm459, %v447, %v462
    %v464 = vsel %vm458, %v461, %v463
    %v465 = vsel %vm457, %v444, %v447
    %v466 = vsel %vm460, %v453, 920167782
    %v467 = vsel %vm459, %v450, %v466
    %v468 = vsel %vm458, %v465, %v467
    %v469 = vsel %vm457, %v447, %v450
    %v470 = vsel %vm460, %v456, 1326507024
    %v471 = vsel %vm459, %v453, %v470
    %v472 = vsel %vm458, %v469, %v471
    %v473 = vshll.u32 %v433, 8
    %v474 = vmul.u32.u64.compose %v473, %v472
    %v475 = vextract.low.u32 %v474
    %v476 = vextract.high.u32 %v474
    %v477 = vmul.u32.u64.compose %v473, %v468
    %v478 = vextract.low.u32 %v477
    %v479 = vextract.high.u32 %v477
    %v480 = vmul.u32 %v473, %v464
    %v481 = vadd.s32 %v476, %v478
    %vm482 = vc.u32 %v476, %v478
    %v483 = vadd.s32 %v479, 1
    %v484 = vsel %vm482, %v483, %v479
    %v485 = vadd.s32 %v480, %v484
    %v486 = vadd.s32 %v485, 536870912
    %v487 = vshrl.u32 %v486, 30
    %v488 = vshll.u32 %v487, 30
    %v489 = vsub.s32 %v485, %v488
    %vm490 = vcmp.lt.s32.totalorder %v489, 0
    %v491 = vsub.s32 0, %v489
    %v492 = vsel %vm490, %v491, %v489
    %v493 = vclz %v492
    %v494 = vsub.s32 %v493, 2
    %vm495 = vcmp.gt.s32.totalorder 0, %v494
    %v496 = vsel %vm495, 0, %v494
    %v497 = vsub.s32 32, %v496
    %v498 = vshll.u32 %v489, %v496
    %v499 = vshrl.u32 %v481, %v497
    %v500 = vor.u32 %v498, %v499
    %v501 = vsub.s32 4294967266, %v496
    %v502 = vadd.s32 %v501, 127
    %v503 = vshll.u32 %v502, 23
    %v504 = vor.u32 4788187, %v503
    %v505 = vand.u32 2147483647, %v504
    %v507 = vcvt.s32.f32 %v500
    %v508 = vmul.f32 %v507, %v505
    %v509 = vxor.u32 %v508, 2147483648
    %v510 = vsel %vm427, %v509, %v508
    %v511 = vsub.s32 4, %v487
    %v512 = vsel %vm427, %v511, %v487
    %v513 = vsel %vm426, %v113, %v510
    %v514 = vsel %vm426, 0, %v512
    %v515 = vcosq.f32.pop %v513
    %v516 = vsinq.f32.pop %v513
    %vm517 = vweird.f32 %v113
    %v518 = vand.u32 %v514, 3
    %vm519 = vcmp.lt.s32.totalorder %v518, 2
    %vm520 = vcmp.eq.s32.totalorder %v518, 0
    %v521 = vxor.u32 %v516, 2147483648
    %v522 = vsel %vm520, %v515, %v521
    %vm523 = vcmp.eq.s32.totalorder %v518, 2
    %v524 = vxor.u32 %v515, 2147483648
    %v525 = vsel %vm523, %v524, %v516
    %v526 = vsel %vm519, %v522, %v525
    %v527 = vsel %vm517, nan, %v526
    %v528 = vpack.c.bf16 %v217, %v217
    %v529 = vpack.c.bf16 %v321, %v321
    %v530 = vpack.c.bf16 %v424, %v424
    %v531 = vpack.c.bf16 %v527, %v527
    %v532 = vld [vmem:[#allocation2] sm:$0xff]
    %v533 = vld [vmem:[#allocation2 + $0x8] sm:$0xff]
    %v534 = vld [vmem:[#allocation2 + $0x10] sm:$0xff]
    %v535 = vld [vmem:[#allocation2 + $0x18] sm:$0xff]
    %v536 = vld [vmem:[#allocation2 + $0x20] sm:$0xff]
    %v537 = vld [vmem:[#allocation2 + $0x28] sm:$0xff]
    %v538 = vld [vmem:[#allocation2 + $0x30] sm:$0xff]
    %v539 = vld [vmem:[#allocation2 + $0x38] sm:$0xff]
    %v540 = vld [vmem:[#allocation2 + $0x40] sm:$0xff]
    %v541 = vld [vmem:[#allocation2 + $0x48] sm:$0xff]
    %v542 = vld [vmem:[#allocation2 + $0x50] sm:$0xff]
    %v543 = vld [vmem:[#allocation2 + $0x58] sm:$0xff]
    %v544 = vld [vmem:[#allocation2 + $0x60] sm:$0xff]
    %v545 = vld [vmem:[#allocation2 + $0x68] sm:$0xff]
    %v546 = vld [vmem:[#allocation2 + $0x70] sm:$0xff]
    %v547 = vld [vmem:[#allocation2 + $0x78] sm:$0xff]
    %v548 = vld [vmem:[#allocation2 + $0x80] sm:$0xff]
    %v549 = vld [vmem:[#allocation2 + $0x88] sm:$0xff]
    %v550 = vld [vmem:[#allocation2 + $0x90] sm:$0xff]
    %v551 = vld [vmem:[#allocation2 + $0x98] sm:$0xff]
    %v552 = vld [vmem:[#allocation2 + $0xa0] sm:$0xff]
    %v553 = vld [vmem:[#allocation2 + $0xa8] sm:$0xff]
    %v554 = vld [vmem:[#allocation2 + $0xb0] sm:$0xff]
    %v555 = vld [vmem:[#allocation2 + $0xb8] sm:$0xff]
    %v556 = vld [vmem:[#allocation2 + $0xc0] sm:$0xff]
    %v557 = vld [vmem:[#allocation2 + $0xc8] sm:$0xff]
    %v558 = vld [vmem:[#allocation2 + $0xd0] sm:$0xff]
    %v559 = vld [vmem:[#allocation2 + $0xd8] sm:$0xff]
    %v560 = vld [vmem:[#allocation2 + $0xe0] sm:$0xff]
    %v561 = vld [vmem:[#allocation2 + $0xe8] sm:$0xff]
    %v562 = vld [vmem:[#allocation2 + $0xf0] sm:$0xff]
    %v563 = vld [vmem:[#allocation2 + $0xf8] sm:$0xff]
    %v564 = vld [vmem:[#allocation2 + $0x100] sm:$0xff]
    %v565 = vld [vmem:[#allocation2 + $0x108] sm:$0xff]
    %v566 = vld [vmem:[#allocation2 + $0x110] sm:$0xff]
    %v567 = vld [vmem:[#allocation2 + $0x118] sm:$0xff]
    %v568 = vld [vmem:[#allocation2 + $0x120] sm:$0xff]
    %v569 = vld [vmem:[#allocation2 + $0x128] sm:$0xff]
    %v570 = vld [vmem:[#allocation2 + $0x130] sm:$0xff]
    %v571 = vld [vmem:[#allocation2 + $0x138] sm:$0xff]
    %v572 = vld [vmem:[#allocation2 + $0x140] sm:$0xff]
    %v573 = vld [vmem:[#allocation2 + $0x148] sm:$0xff]
    %v574 = vld [vmem:[#allocation2 + $0x150] sm:$0xff]
    %v575 = vld [vmem:[#allocation2 + $0x158] sm:$0xff]
    %v576 = vld [vmem:[#allocation2 + $0x160] sm:$0xff]
    %v577 = vld [vmem:[#allocation2 + $0x168] sm:$0xff]
    %v578 = vld [vmem:[#allocation2 + $0x170] sm:$0xff]
    %v579 = vld [vmem:[#allocation2 + $0x178] sm:$0xff]
    %v580 = vld [vmem:[#allocation2 + $0x180] sm:$0xff]
    %v581 = vld [vmem:[#allocation2 + $0x188] sm:$0xff]
    %v582 = vld [vmem:[#allocation2 + $0x190] sm:$0xff]
    %v583 = vld [vmem:[#allocation2 + $0x198] sm:$0xff]
    %v584 = vld [vmem:[#allocation2 + $0x1a0] sm:$0xff]
    %v585 = vld [vmem:[#allocation2 + $0x1a8] sm:$0xff]
    %v586 = vld [vmem:[#allocation2 + $0x1b0] sm:$0xff]
    %v587 = vld [vmem:[#allocation2 + $0x1b8] sm:$0xff]
    %v588 = vld [vmem:[#allocation2 + $0x1c0] sm:$0xff]
    %v589 = vld [vmem:[#allocation2 + $0x1c8] sm:$0xff]
    %v590 = vld [vmem:[#allocation2 + $0x1d0] sm:$0xff]
    %v591 = vld [vmem:[#allocation2 + $0x1d8] sm:$0xff]
    %v592 = vld [vmem:[#allocation2 + $0x1e0] sm:$0xff]
    %v593 = vld [vmem:[#allocation2 + $0x1e8] sm:$0xff]
    %v594 = vld [vmem:[#allocation2 + $0x1f0] sm:$0xff]
    %v595 = vld [vmem:[#allocation2 + $0x1f8] sm:$0xff]
    %v596 = vld [vmem:[#allocation2 + $0x200] sm:$0xff]
    %v597 = vld [vmem:[#allocation2 + $0x208] sm:$0xff]
    %v598 = vld [vmem:[#allocation2 + $0x210] sm:$0xff]
    %v599 = vld [vmem:[#allocation2 + $0x218] sm:$0xff]
    %v600 = vld [vmem:[#allocation2 + $0x220] sm:$0xff]
    %v601 = vld [vmem:[#allocation2 + $0x228] sm:$0xff]
    %v602 = vld [vmem:[#allocation2 + $0x230] sm:$0xff]
    %v603 = vld [vmem:[#allocation2 + $0x238] sm:$0xff]
    %v604 = vld [vmem:[#allocation2 + $0x240] sm:$0xff]
    %v605 = vld [vmem:[#allocation2 + $0x248] sm:$0xff]
    %v606 = vld [vmem:[#allocation2 + $0x250] sm:$0xff]
    %v607 = vld [vmem:[#allocation2 + $0x258] sm:$0xff]
    %v608 = vld [vmem:[#allocation2 + $0x260] sm:$0xff]
    %v609 = vld [vmem:[#allocation2 + $0x268] sm:$0xff]
    %v610 = vld [vmem:[#allocation2 + $0x270] sm:$0xff]
    %v611 = vld [vmem:[#allocation2 + $0x278] sm:$0xff]
    %v612 = vld [vmem:[#allocation2 + $0x280] sm:$0xff]
    %v613 = vld [vmem:[#allocation2 + $0x288] sm:$0xff]
    %v614 = vld [vmem:[#allocation2 + $0x290] sm:$0xff]
    %v615 = vld [vmem:[#allocation2 + $0x298] sm:$0xff]
    %v616 = vld [vmem:[#allocation2 + $0x2a0] sm:$0xff]
    %v617 = vld [vmem:[#allocation2 + $0x2a8] sm:$0xff]
    %v618 = vld [vmem:[#allocation2 + $0x2b0] sm:$0xff]
    %v619 = vld [vmem:[#allocation2 + $0x2b8] sm:$0xff]
    %v620 = vld [vmem:[#allocation2 + $0x2c0] sm:$0xff]
    %v621 = vld [vmem:[#allocation2 + $0x2c8] sm:$0xff]
    %v622 = vld [vmem:[#allocation2 + $0x2d0] sm:$0xff]
    %v623 = vld [vmem:[#allocation2 + $0x2d8] sm:$0xff]
    %v624 = vld [vmem:[#allocation2 + $0x2e0] sm:$0xff]
    %v625 = vld [vmem:[#allocation2 + $0x2e8] sm:$0xff]
    %v626 = vld [vmem:[#allocation2 + $0x2f0] sm:$0xff]
    %v627 = vld [vmem:[#allocation2 + $0x2f8] sm:$0xff]
    %v628 = vld [vmem:[#allocation2 + $0x300] sm:$0xff]
    %v629 = vld [vmem:[#allocation2 + $0x308] sm:$0xff]
    %v630 = vld [vmem:[#allocation2 + $0x310] sm:$0xff]
    %v631 = vld [vmem:[#allocation2 + $0x318] sm:$0xff]
    %v632 = vld [vmem:[#allocation2 + $0x320] sm:$0xff]
    %v633 = vld [vmem:[#allocation2 + $0x328] sm:$0xff]
    %v634 = vld [vmem:[#allocation2 + $0x330] sm:$0xff]
    %v635 = vld [vmem:[#allocation2 + $0x338] sm:$0xff]
    %v636 = vld [vmem:[#allocation2 + $0x340] sm:$0xff]
    %v637 = vld [vmem:[#allocation2 + $0x348] sm:$0xff]
    %v638 = vld [vmem:[#allocation2 + $0x350] sm:$0xff]
    %v639 = vld [vmem:[#allocation2 + $0x358] sm:$0xff]
    %v640 = vld [vmem:[#allocation2 + $0x360] sm:$0xff]
    %v641 = vld [vmem:[#allocation2 + $0x368] sm:$0xff]
    %v642 = vld [vmem:[#allocation2 + $0x370] sm:$0xff]
    %v643 = vld [vmem:[#allocation2 + $0x378] sm:$0xff]
    %v644 = vld [vmem:[#allocation2 + $0x380] sm:$0xff]
    %v645 = vld [vmem:[#allocation2 + $0x388] sm:$0xff]
    %v646 = vld [vmem:[#allocation2 + $0x390] sm:$0xff]
    %v647 = vld [vmem:[#allocation2 + $0x398] sm:$0xff]
    %v648 = vld [vmem:[#allocation2 + $0x3a0] sm:$0xff]
    %v649 = vld [vmem:[#allocation2 + $0x3a8] sm:$0xff]
    %v650 = vld [vmem:[#allocation2 + $0x3b0] sm:$0xff]
    %v651 = vld [vmem:[#allocation2 + $0x3b8] sm:$0xff]
    %v652 = vld [vmem:[#allocation2 + $0x3c0] sm:$0xff]
    %v653 = vld [vmem:[#allocation2 + $0x3c8] sm:$0xff]
    %v654 = vld [vmem:[#allocation2 + $0x3d0] sm:$0xff]
    %v655 = vld [vmem:[#allocation2 + $0x3d8] sm:$0xff]
    %v656 = vld [vmem:[#allocation2 + $0x3e0] sm:$0xff]
    %v657 = vld [vmem:[#allocation2 + $0x3e8] sm:$0xff]
    %v658 = vld [vmem:[#allocation2 + $0x3f0] sm:$0xff]
    %v659 = vld [vmem:[#allocation2 + $0x3f8] sm:$0xff]
    %v660 = vld [vmem:[%s3] sm:$0xf]
    %v662 = vlaneseq
    %v663 = vshrl.u32 %v662, 7
    %v664 = vsub.s32 0, %v663
    %v665 = vrot.slane %v660, %v664
    %v666 = vlaneseq
    %v667 = vshrl.u32 %v666, 7
    %v668 = vsub.s32 1, %v667
    %v669 = vrot.slane %v660, %v668
    %v670 = vlaneseq
    %v671 = vshrl.u32 %v670, 7
    %v672 = vsub.s32 2, %v671
    %v673 = vrot.slane %v660, %v672
    %v674 = vlaneseq
    %v675 = vshrl.u32 %v674, 7
    %v676 = vsub.s32 3, %v675
    %v677 = vrot.slane %v660, %v676
    %v810 = vunpack.c.l.b16 %v532
    %v811 = vunpack.c.h.b16 %v532
    %v812 = vunpack.c.l.b16 %v533
    %v813 = vunpack.c.h.b16 %v533
    %v814 = vunpack.c.l.b16 %v534
    %v815 = vunpack.c.h.b16 %v534
    %v816 = vunpack.c.l.b16 %v535
    %v817 = vunpack.c.h.b16 %v535
    %v818 = vunpack.c.l.b16 %v536
    %v819 = vunpack.c.h.b16 %v536
    %v820 = vunpack.c.l.b16 %v537
    %v821 = vunpack.c.h.b16 %v537
    %v822 = vunpack.c.l.b16 %v538
    %v823 = vunpack.c.h.b16 %v538
    %v824 = vunpack.c.l.b16 %v539
    %v825 = vunpack.c.h.b16 %v539
    %v826 = vunpack.c.l.b16 %v540
    %v827 = vunpack.c.h.b16 %v540
    %v828 = vunpack.c.l.b16 %v541
    %v829 = vunpack.c.h.b16 %v541
    %v830 = vunpack.c.l.b16 %v542
    %v831 = vunpack.c.h.b16 %v542
    %v832 = vunpack.c.l.b16 %v543
    %v833 = vunpack.c.h.b16 %v543
    %v834 = vunpack.c.l.b16 %v544
    %v835 = vunpack.c.h.b16 %v544
    %v836 = vunpack.c.l.b16 %v545
    %v837 = vunpack.c.h.b16 %v545
    %v838 = vunpack.c.l.b16 %v546
    %v839 = vunpack.c.h.b16 %v546
    %v840 = vunpack.c.l.b16 %v547
    %v841 = vunpack.c.h.b16 %v547
    %v842 = vunpack.c.l.b16 %v548
    %v843 = vunpack.c.h.b16 %v548
    %v844 = vunpack.c.l.b16 %v549
    %v845 = vunpack.c.h.b16 %v549
    %v846 = vunpack.c.l.b16 %v550
    %v847 = vunpack.c.h.b16 %v550
    %v848 = vunpack.c.l.b16 %v551
    %v849 = vunpack.c.h.b16 %v551
    %v850 = vunpack.c.l.b16 %v552
    %v851 = vunpack.c.h.b16 %v552
    %v852 = vunpack.c.l.b16 %v553
    %v853 = vunpack.c.h.b16 %v553
    %v854 = vunpack.c.l.b16 %v554
    %v855 = vunpack.c.h.b16 %v554
    %v856 = vunpack.c.l.b16 %v555
    %v857 = vunpack.c.h.b16 %v555
    %v858 = vunpack.c.l.b16 %v556
    %v859 = vunpack.c.h.b16 %v556
    %v860 = vunpack.c.l.b16 %v557
    %v861 = vunpack.c.h.b16 %v557
    %v862 = vunpack.c.l.b16 %v558
    %v863 = vunpack.c.h.b16 %v558
    %v864 = vunpack.c.l.b16 %v559
    %v865 = vunpack.c.h.b16 %v559
    %v866 = vunpack.c.l.b16 %v560
    %v867 = vunpack.c.h.b16 %v560
    %v868 = vunpack.c.l.b16 %v561
    %v869 = vunpack.c.h.b16 %v561
    %v870 = vunpack.c.l.b16 %v562
    %v871 = vunpack.c.h.b16 %v562
    %v872 = vunpack.c.l.b16 %v563
    %v873 = vunpack.c.h.b16 %v563
    %v874 = vunpack.c.l.b16 %v564
    %v875 = vunpack.c.h.b16 %v564
    %v876 = vunpack.c.l.b16 %v565
    %v877 = vunpack.c.h.b16 %v565
    %v878 = vunpack.c.l.b16 %v566
    %v879 = vunpack.c.h.b16 %v566
    %v880 = vunpack.c.l.b16 %v567
    %v881 = vunpack.c.h.b16 %v567
    %v882 = vunpack.c.l.b16 %v568
    %v883 = vunpack.c.h.b16 %v568
    %v884 = vunpack.c.l.b16 %v569
    %v885 = vunpack.c.h.b16 %v569
    %v886 = vunpack.c.l.b16 %v570
    %v887 = vunpack.c.h.b16 %v570
    %v888 = vunpack.c.l.b16 %v571
    %v889 = vunpack.c.h.b16 %v571
    %v890 = vunpack.c.l.b16 %v572
    %v891 = vunpack.c.h.b16 %v572
    %v892 = vunpack.c.l.b16 %v573
    %v893 = vunpack.c.h.b16 %v573
    %v894 = vunpack.c.l.b16 %v574
    %v895 = vunpack.c.h.b16 %v574
    %v896 = vunpack.c.l.b16 %v575
    %v897 = vunpack.c.h.b16 %v575
    %v898 = vunpack.c.l.b16 %v576
    %v899 = vunpack.c.h.b16 %v576
    %v900 = vunpack.c.l.b16 %v577
    %v901 = vunpack.c.h.b16 %v577
    %v902 = vunpack.c.l.b16 %v578
    %v903 = vunpack.c.h.b16 %v578
    %v904 = vunpack.c.l.b16 %v579
    %v905 = vunpack.c.h.b16 %v579
    %v906 = vunpack.c.l.b16 %v580
    %v907 = vunpack.c.h.b16 %v580
    %v908 = vunpack.c.l.b16 %v581
    %v909 = vunpack.c.h.b16 %v581
    %v910 = vunpack.c.l.b16 %v582
    %v911 = vunpack.c.h.b16 %v582
    %v912 = vunpack.c.l.b16 %v583
    %v913 = vunpack.c.h.b16 %v583
    %v914 = vunpack.c.l.b16 %v584
    %v915 = vunpack.c.h.b16 %v584
    %v916 = vunpack.c.l.b16 %v585
    %v917 = vunpack.c.h.b16 %v585
    %v918 = vunpack.c.l.b16 %v586
    %v919 = vunpack.c.h.b16 %v586
    %v920 = vunpack.c.l.b16 %v587
    %v921 = vunpack.c.h.b16 %v587
    %v922 = vunpack.c.l.b16 %v588
    %v923 = vunpack.c.h.b16 %v588
    %v924 = vunpack.c.l.b16 %v589
    %v925 = vunpack.c.h.b16 %v589
    %v926 = vunpack.c.l.b16 %v590
    %v927 = vunpack.c.h.b16 %v590
    %v928 = vunpack.c.l.b16 %v591
    %v929 = vunpack.c.h.b16 %v591
    %v930 = vunpack.c.l.b16 %v592
    %v931 = vunpack.c.h.b16 %v592
    %v932 = vunpack.c.l.b16 %v593
    %v933 = vunpack.c.h.b16 %v593
    %v934 = vunpack.c.l.b16 %v594
    %v935 = vunpack.c.h.b16 %v594
    %v936 = vunpack.c.l.b16 %v595
    %v937 = vunpack.c.h.b16 %v595
    %v938 = vunpack.c.l.b16 %v596
    %v939 = vunpack.c.h.b16 %v596
    %v940 = vunpack.c.l.b16 %v597
    %v941 = vunpack.c.h.b16 %v597
    %v942 = vunpack.c.l.b16 %v598
    %v943 = vunpack.c.h.b16 %v598
    %v944 = vunpack.c.l.b16 %v599
    %v945 = vunpack.c.h.b16 %v599
    %v946 = vunpack.c.l.b16 %v600
    %v947 = vunpack.c.h.b16 %v600
    %v948 = vunpack.c.l.b16 %v601
    %v949 = vunpack.c.h.b16 %v601
    %v950 = vunpack.c.l.b16 %v602
    %v951 = vunpack.c.h.b16 %v602
    %v952 = vunpack.c.l.b16 %v603
    %v953 = vunpack.c.h.b16 %v603
    %v954 = vunpack.c.l.b16 %v604
    %v955 = vunpack.c.h.b16 %v604
    %v956 = vunpack.c.l.b16 %v605
    %v957 = vunpack.c.h.b16 %v605
    %v958 = vunpack.c.l.b16 %v606
    %v959 = vunpack.c.h.b16 %v606
    %v960 = vunpack.c.l.b16 %v607
    %v961 = vunpack.c.h.b16 %v607
    %v962 = vunpack.c.l.b16 %v608
    %v963 = vunpack.c.h.b16 %v608
    %v964 = vunpack.c.l.b16 %v609
    %v965 = vunpack.c.h.b16 %v609
    %v966 = vunpack.c.l.b16 %v610
    %v967 = vunpack.c.h.b16 %v610
    %v968 = vunpack.c.l.b16 %v611
    %v969 = vunpack.c.h.b16 %v611
    %v970 = vunpack.c.l.b16 %v612
    %v971 = vunpack.c.h.b16 %v612
    %v972 = vunpack.c.l.b16 %v613
    %v973 = vunpack.c.h.b16 %v613
    %v974 = vunpack.c.l.b16 %v614
    %v975 = vunpack.c.h.b16 %v614
    %v976 = vunpack.c.l.b16 %v615
    %v977 = vunpack.c.h.b16 %v615
    %v978 = vunpack.c.l.b16 %v616
    %v979 = vunpack.c.h.b16 %v616
    %v980 = vunpack.c.l.b16 %v617
    %v981 = vunpack.c.h.b16 %v617
    %v982 = vunpack.c.l.b16 %v618
    %v983 = vunpack.c.h.b16 %v618
    %v984 = vunpack.c.l.b16 %v619
    %v985 = vunpack.c.h.b16 %v619
    %v986 = vunpack.c.l.b16 %v620
    %v987 = vunpack.c.h.b16 %v620
    %v988 = vunpack.c.l.b16 %v621
    %v989 = vunpack.c.h.b16 %v621
    %v990 = vunpack.c.l.b16 %v622
    %v991 = vunpack.c.h.b16 %v622
    %v992 = vunpack.c.l.b16 %v623
    %v993 = vunpack.c.h.b16 %v623
    %v994 = vunpack.c.l.b16 %v624
    %v995 = vunpack.c.h.b16 %v624
    %v996 = vunpack.c.l.b16 %v625
    %v997 = vunpack.c.h.b16 %v625
    %v998 = vunpack.c.l.b16 %v626
    %v999 = vunpack.c.h.b16 %v626
    %v1000 = vunpack.c.l.b16 %v627
    %v1001 = vunpack.c.h.b16 %v627
    %v1002 = vunpack.c.l.b16 %v628
    %v1003 = vunpack.c.h.b16 %v628
    %v1004 = vunpack.c.l.b16 %v629
    %v1005 = vunpack.c.h.b16 %v629
    %v1006 = vunpack.c.l.b16 %v630
    %v1007 = vunpack.c.h.b16 %v630
    %v1008 = vunpack.c.l.b16 %v631
    %v1009 = vunpack.c.h.b16 %v631
    %v1010 = vunpack.c.l.b16 %v632
    %v1011 = vunpack.c.h.b16 %v632
    %v1012 = vunpack.c.l.b16 %v633
    %v1013 = vunpack.c.h.b16 %v633
    %v1014 = vunpack.c.l.b16 %v634
    %v1015 = vunpack.c.h.b16 %v634
    %v1016 = vunpack.c.l.b16 %v635
    %v1017 = vunpack.c.h.b16 %v635
    %v1018 = vunpack.c.l.b16 %v636
    %v1019 = vunpack.c.h.b16 %v636
    %v1020 = vunpack.c.l.b16 %v637
    %v1021 = vunpack.c.h.b16 %v637
    %v1022 = vunpack.c.l.b16 %v638
    %v1023 = vunpack.c.h.b16 %v638
    %v1024 = vunpack.c.l.b16 %v639
    %v1025 = vunpack.c.h.b16 %v639
    %v1026 = vunpack.c.l.b16 %v640
    %v1027 = vunpack.c.h.b16 %v640
    %v1028 = vunpack.c.l.b16 %v641
    %v1029 = vunpack.c.h.b16 %v641
    %v1030 = vunpack.c.l.b16 %v642
    %v1031 = vunpack.c.h.b16 %v642
    %v1032 = vunpack.c.l.b16 %v643
    %v1033 = vunpack.c.h.b16 %v643
    %v1034 = vunpack.c.l.b16 %v644
    %v1035 = vunpack.c.h.b16 %v644
    %v1036 = vunpack.c.l.b16 %v645
    %v1037 = vunpack.c.h.b16 %v645
    %v1038 = vunpack.c.l.b16 %v646
    %v1039 = vunpack.c.h.b16 %v646
    %v1040 = vunpack.c.l.b16 %v647
    %v1041 = vunpack.c.h.b16 %v647
    %v1042 = vunpack.c.l.b16 %v648
    %v1043 = vunpack.c.h.b16 %v648
    %v1044 = vunpack.c.l.b16 %v649
    %v1045 = vunpack.c.h.b16 %v649
    %v1046 = vunpack.c.l.b16 %v650
    %v1047 = vunpack.c.h.b16 %v650
    %v1048 = vunpack.c.l.b16 %v651
    %v1049 = vunpack.c.h.b16 %v651
    %v1050 = vunpack.c.l.b16 %v652
    %v1051 = vunpack.c.h.b16 %v652
    %v1052 = vunpack.c.l.b16 %v653
    %v1053 = vunpack.c.h.b16 %v653
    %v1054 = vunpack.c.l.b16 %v654
    %v1055 = vunpack.c.h.b16 %v654
    %v1056 = vunpack.c.l.b16 %v655
    %v1057 = vunpack.c.h.b16 %v655
    %v1058 = vunpack.c.l.b16 %v656
    %v1059 = vunpack.c.h.b16 %v656
    %v1060 = vunpack.c.l.b16 %v657
    %v1061 = vunpack.c.h.b16 %v657
    %v1062 = vunpack.c.l.b16 %v658
    %v1063 = vunpack.c.h.b16 %v658
    %v1064 = vunpack.c.l.b16 %v659
    %v1065 = vunpack.c.h.b16 %v659
    %v1066 = vpack.c.b16 %v814, %v810
    %v1067 = vpack.c.b16 %v815, %v811
    %v1068 = vpack.c.b16 %v816, %v812
    %v1069 = vpack.c.b16 %v817, %v813
    %v1070 = vpack.c.b16 %v822, %v818
    %v1071 = vpack.c.b16 %v823, %v819
    %v1072 = vpack.c.b16 %v824, %v820
    %v1073 = vpack.c.b16 %v825, %v821
    %v1074 = vpack.c.b16 %v830, %v826
    %v1075 = vpack.c.b16 %v831, %v827
    %v1076 = vpack.c.b16 %v832, %v828
    %v1077 = vpack.c.b16 %v833, %v829
    %v1078 = vpack.c.b16 %v838, %v834
    %v1079 = vpack.c.b16 %v839, %v835
    %v1080 = vpack.c.b16 %v840, %v836
    %v1081 = vpack.c.b16 %v841, %v837
    %v1082 = vpack.c.b16 %v846, %v842
    %v1083 = vpack.c.b16 %v847, %v843
    %v1084 = vpack.c.b16 %v848, %v844
    %v1085 = vpack.c.b16 %v849, %v845
    %v1086 = vpack.c.b16 %v854, %v850
    %v1087 = vpack.c.b16 %v855, %v851
    %v1088 = vpack.c.b16 %v856, %v852
    %v1089 = vpack.c.b16 %v857, %v853
    %v1090 = vpack.c.b16 %v862, %v858
    %v1091 = vpack.c.b16 %v863, %v859
    %v1092 = vpack.c.b16 %v864, %v860
    %v1093 = vpack.c.b16 %v865, %v861
    %v1094 = vpack.c.b16 %v870, %v866
    %v1095 = vpack.c.b16 %v871, %v867
    %v1096 = vpack.c.b16 %v872, %v868
    %v1097 = vpack.c.b16 %v873, %v869
    %v1098 = vpack.c.b16 %v878, %v874
    %v1099 = vpack.c.b16 %v879, %v875
    %v1100 = vpack.c.b16 %v880, %v876
    %v1101 = vpack.c.b16 %v881, %v877
    %v1102 = vpack.c.b16 %v886, %v882
    %v1103 = vpack.c.b16 %v887, %v883
    %v1104 = vpack.c.b16 %v888, %v884
    %v1105 = vpack.c.b16 %v889, %v885
    %v1106 = vpack.c.b16 %v894, %v890
    %v1107 = vpack.c.b16 %v895, %v891
    %v1108 = vpack.c.b16 %v896, %v892
    %v1109 = vpack.c.b16 %v897, %v893
    %v1110 = vpack.c.b16 %v902, %v898
    %v1111 = vpack.c.b16 %v903, %v899
    %v1112 = vpack.c.b16 %v904, %v900
    %v1113 = vpack.c.b16 %v905, %v901
    %v1114 = vpack.c.b16 %v910, %v906
    %v1115 = vpack.c.b16 %v911, %v907
    %v1116 = vpack.c.b16 %v912, %v908
    %v1117 = vpack.c.b16 %v913, %v909
    %v1118 = vpack.c.b16 %v918, %v914
    %v1119 = vpack.c.b16 %v919, %v915
    %v1120 = vpack.c.b16 %v920, %v916
    %v1121 = vpack.c.b16 %v921, %v917
    %v1122 = vpack.c.b16 %v926, %v922
    %v1123 = vpack.c.b16 %v927, %v923
    %v1124 = vpack.c.b16 %v928, %v924
    %v1125 = vpack.c.b16 %v929, %v925
    %v1126 = vpack.c.b16 %v934, %v930
    %v1127 = vpack.c.b16 %v935, %v931
    %v1128 = vpack.c.b16 %v936, %v932
    %v1129 = vpack.c.b16 %v937, %v933
    %v1130 = vpack.c.b16 %v942, %v938
    %v1131 = vpack.c.b16 %v943, %v939
    %v1132 = vpack.c.b16 %v944, %v940
    %v1133 = vpack.c.b16 %v945, %v941
    %v1134 = vpack.c.b16 %v950, %v946
    %v1135 = vpack.c.b16 %v951, %v947
    %v1136 = vpack.c.b16 %v952, %v948
    %v1137 = vpack.c.b16 %v953, %v949
    %v1138 = vpack.c.b16 %v958, %v954
    %v1139 = vpack.c.b16 %v959, %v955
    %v1140 = vpack.c.b16 %v960, %v956
    %v1141 = vpack.c.b16 %v961, %v957
    %v1142 = vpack.c.b16 %v966, %v962
    %v1143 = vpack.c.b16 %v967, %v963
    %v1144 = vpack.c.b16 %v968, %v964
    %v1145 = vpack.c.b16 %v969, %v965
    %v1146 = vpack.c.b16 %v974, %v970
    %v1147 = vpack.c.b16 %v975, %v971
    %v1148 = vpack.c.b16 %v976, %v972
    %v1149 = vpack.c.b16 %v977, %v973
    %v1150 = vpack.c.b16 %v982, %v978
    %v1151 = vpack.c.b16 %v983, %v979
    %v1152 = vpack.c.b16 %v984, %v980
    %v1153 = vpack.c.b16 %v985, %v981
    %v1154 = vpack.c.b16 %v990, %v986
    %v1155 = vpack.c.b16 %v991, %v987
    %v1156 = vpack.c.b16 %v992, %v988
    %v1157 = vpack.c.b16 %v993, %v989
    %v1158 = vpack.c.b16 %v998, %v994
    %v1159 = vpack.c.b16 %v999, %v995
    %v1160 = vpack.c.b16 %v1000, %v996
    %v1161 = vpack.c.b16 %v1001, %v997
    %v1162 = vpack.c.b16 %v1006, %v1002
    %v1163 = vpack.c.b16 %v1007, %v1003
    %v1164 = vpack.c.b16 %v1008, %v1004
    %v1165 = vpack.c.b16 %v1009, %v1005
    %v1166 = vpack.c.b16 %v1014, %v1010
    %v1167 = vpack.c.b16 %v1015, %v1011
    %v1168 = vpack.c.b16 %v1016, %v1012
    %v1169 = vpack.c.b16 %v1017, %v1013
    %v1170 = vpack.c.b16 %v1022, %v1018
    %v1171 = vpack.c.b16 %v1023, %v1019
    %v1172 = vpack.c.b16 %v1024, %v1020
    %v1173 = vpack.c.b16 %v1025, %v1021
    %v1174 = vpack.c.b16 %v1030, %v1026
    %v1175 = vpack.c.b16 %v1031, %v1027
    %v1176 = vpack.c.b16 %v1032, %v1028
    %v1177 = vpack.c.b16 %v1033, %v1029
    %v1178 = vpack.c.b16 %v1038, %v1034
    %v1179 = vpack.c.b16 %v1039, %v1035
    %v1180 = vpack.c.b16 %v1040, %v1036
    %v1181 = vpack.c.b16 %v1041, %v1037
    %v1182 = vpack.c.b16 %v1046, %v1042
    %v1183 = vpack.c.b16 %v1047, %v1043
    %v1184 = vpack.c.b16 %v1048, %v1044
    %v1185 = vpack.c.b16 %v1049, %v1045
    %v1186 = vpack.c.b16 %v1054, %v1050
    %v1187 = vpack.c.b16 %v1055, %v1051
    %v1188 = vpack.c.b16 %v1056, %v1052
    %v1189 = vpack.c.b16 %v1057, %v1053
    %v1190 = vpack.c.b16 %v1062, %v1058
    %v1191 = vpack.c.b16 %v1063, %v1059
    %v1192 = vpack.c.b16 %v1064, %v1060
    %v1193 = vpack.c.b16 %v1065, %v1061
    %1322 = vmatprep.subr.bf16.mxu0 %v1067
    %1323 = vmatpush1.bf16.msra.mxu0 %v1066
    %1324 = vmatprep.subr.bf16.mxu0 %v1071
    %1325 = vmatpush1.bf16.msra.mxu0 %v1070
    %1326 = vmatprep.subr.bf16.mxu0 %v1075
    %1327 = vmatpush1.bf16.msra.mxu0 %v1074
    %1328 = vmatprep.subr.bf16.mxu0 %v1079
    %1329 = vmatpush1.bf16.msra.mxu0 %v1078
    %1330 = vmatprep.subr.bf16.mxu0 %v1083
    %1331 = vmatpush1.bf16.msra.mxu0 %v1082
    %1332 = vmatprep.subr.bf16.mxu0 %v1087
    %1333 = vmatpush1.bf16.msra.mxu0 %v1086
    %1334 = vmatprep.subr.bf16.mxu0 %v1091
    %1335 = vmatpush1.bf16.msra.mxu0 %v1090
    %1336 = vmatprep.subr.bf16.mxu0 %v1095
    %1337 = vmatpush1.bf16.msra.mxu0 %v1094
    %1338 = vmatprep.subr.bf16.mxu0 %v1099
    %1339 = vmatpush1.bf16.msra.mxu0 %v1098
    %1340 = vmatprep.subr.bf16.mxu0 %v1103
    %1341 = vmatpush1.bf16.msra.mxu0 %v1102
    %1342 = vmatprep.subr.bf16.mxu0 %v1107
    %1343 = vmatpush1.bf16.msra.mxu0 %v1106
    %1344 = vmatprep.subr.bf16.mxu0 %v1111
    %1345 = vmatpush1.bf16.msra.mxu0 %v1110
    %1346 = vmatprep.subr.bf16.mxu0 %v1115
    %1347 = vmatpush1.bf16.msra.mxu0 %v1114
    %1348 = vmatprep.subr.bf16.mxu0 %v1119
    %1349 = vmatpush1.bf16.msra.mxu0 %v1118
    %1350 = vmatprep.subr.bf16.mxu0 %v1123
    %1351 = vmatpush1.bf16.msra.mxu0 %v1122
    %1352 = vmatprep.subr.bf16.mxu0 %v1127
    %1353 = vmatpush1.bf16.msra.mxu0 %v1126
    %1354 = vmatprep.mubr.bf16.mxu0 %v529
    %1355 = vmatmul.mubr.bf16.gmra.mrb[0].mxu0 %v528
    %v1356 = vpop.f32.mrb[0].mxu0
    %v1357 = vadd.f32 %v665, %v1356
    %v1358 = vpop.f32.mrb[0].mxu0
    %v1359 = vadd.f32 %v669, %v1358
    %v1360 = vpop.f32.mrb[0].mxu0
    %v1361 = vpop.f32.mrb[0].mxu0
    %1362 = vdwg.mxu0
    %1363 = vmatprep.subr.bf16.mxu0 %v1131
    %1364 = vmatpush1.bf16.msra.mxu0 %v1130
    %1365 = vmatprep.subr.bf16.mxu0 %v1135
    %1366 = vmatpush1.bf16.msra.mxu0 %v1134
    %1367 = vmatprep.subr.bf16.mxu0 %v1139
    %1368 = vmatpush1.bf16.msra.mxu0 %v1138
    %1369 = vmatprep.subr.bf16.mxu0 %v1143
    %1370 = vmatpush1.bf16.msra.mxu0 %v1142
    %1371 = vmatprep.subr.bf16.mxu0 %v1147
    %1372 = vmatpush1.bf16.msra.mxu0 %v1146
    %1373 = vmatprep.subr.bf16.mxu0 %v1151
    %1374 = vmatpush1.bf16.msra.mxu0 %v1150
    %1375 = vmatprep.subr.bf16.mxu0 %v1155
    %1376 = vmatpush1.bf16.msra.mxu0 %v1154
    %1377 = vmatprep.subr.bf16.mxu0 %v1159
    %1378 = vmatpush1.bf16.msra.mxu0 %v1158
    %1379 = vmatprep.subr.bf16.mxu0 %v1163
    %1380 = vmatpush1.bf16.msra.mxu0 %v1162
    %1381 = vmatprep.subr.bf16.mxu0 %v1167
    %1382 = vmatpush1.bf16.msra.mxu0 %v1166
    %1383 = vmatprep.subr.bf16.mxu0 %v1171
    %1384 = vmatpush1.bf16.msra.mxu0 %v1170
    %1385 = vmatprep.subr.bf16.mxu0 %v1175
    %1386 = vmatpush1.bf16.msra.mxu0 %v1174
    %1387 = vmatprep.subr.bf16.mxu0 %v1179
    %1388 = vmatpush1.bf16.msra.mxu0 %v1178
    %1389 = vmatprep.subr.bf16.mxu0 %v1183
    %1390 = vmatpush1.bf16.msra.mxu0 %v1182
    %1391 = vmatprep.subr.bf16.mxu0 %v1187
    %1392 = vmatpush1.bf16.msra.mxu0 %v1186
    %1393 = vmatprep.subr.bf16.mxu0 %v1191
    %1394 = vmatpush1.bf16.msra.mxu0 %v1190
    %1395 = vmatprep.mubr.bf16.mxu0 %v531
    %1396 = vmatmul.mubr.bf16.gmra.mrb[0].mxu0 %v530
    %v1397 = vpop.f32.mrb[0].mxu0
    %v1398 = vadd.f32 %v1357, %v1397
    %v1399 = vpop.f32.mrb[0].mxu0
    %v1400 = vadd.f32 %v1359, %v1399
    %v1401 = vpop.f32.mrb[0].mxu0
    %v1402 = vpop.f32.mrb[0].mxu0
    %1403 = vdwg.mxu0
    %1404 = vmatprep.subr.bf16.mxu0 %v1069
    %1405 = vmatpush1.bf16.msra.mxu0 %v1068
    %1406 = vmatprep.subr.bf16.mxu0 %v1073
    %1407 = vmatpush1.bf16.msra.mxu0 %v1072
    %1408 = vmatprep.subr.bf16.mxu0 %v1077
    %1409 = vmatpush1.bf16.msra.mxu0 %v1076
    %1410 = vmatprep.subr.bf16.mxu0 %v1081
    %1411 = vmatpush1.bf16.msra.mxu0 %v1080
    %1412 = vmatprep.subr.bf16.mxu0 %v1085
    %1413 = vmatpush1.bf16.msra.mxu0 %v1084
    %1414 = vmatprep.subr.bf16.mxu0 %v1089
    %1415 = vmatpush1.bf16.msra.mxu0 %v1088
    %1416 = vmatprep.subr.bf16.mxu0 %v1093
    %1417 = vmatpush1.bf16.msra.mxu0 %v1092
    %1418 = vmatprep.subr.bf16.mxu0 %v1097
    %1419 = vmatpush1.bf16.msra.mxu0 %v1096
    %1420 = vmatprep.subr.bf16.mxu0 %v1101
    %1421 = vmatpush1.bf16.msra.mxu0 %v1100
    %1422 = vmatprep.subr.bf16.mxu0 %v1105
    %1423 = vmatpush1.bf16.msra.mxu0 %v1104
    %1424 = vmatprep.subr.bf16.mxu0 %v1109
    %1425 = vmatpush1.bf16.msra.mxu0 %v1108
    %1426 = vmatprep.subr.bf16.mxu0 %v1113
    %1427 = vmatpush1.bf16.msra.mxu0 %v1112
    %1428 = vmatprep.subr.bf16.mxu0 %v1117
    %1429 = vmatpush1.bf16.msra.mxu0 %v1116
    %1430 = vmatprep.subr.bf16.mxu0 %v1121
    %1431 = vmatpush1.bf16.msra.mxu0 %v1120
    %1432 = vmatprep.subr.bf16.mxu0 %v1125
    %1433 = vmatpush1.bf16.msra.mxu0 %v1124
    %1434 = vmatprep.subr.bf16.mxu0 %v1129
    %1435 = vmatpush1.bf16.msra.mxu0 %v1128
    %1436 = vmatprep.mubr.bf16.mxu0 %v529
    %1437 = vmatmul.mubr.bf16.gmra.mrb[0].mxu0 %v528
    %v1438 = vpop.f32.mrb[0].mxu0
    %v1439 = vadd.f32 %v673, %v1438
    %v1440 = vpop.f32.mrb[0].mxu0
    %v1441 = vadd.f32 %v677, %v1440
    %v1442 = vpop.f32.mrb[0].mxu0
    %v1443 = vpop.f32.mrb[0].mxu0
    %1444 = vdwg.mxu0
    %1445 = vmatprep.subr.bf16.mxu0 %v1133
    %1446 = vmatpush1.bf16.msra.mxu0 %v1132
    %1447 = vmatprep.subr.bf16.mxu0 %v1137
    %1448 = vmatpush1.bf16.msra.mxu0 %v1136
    %1449 = vmatprep.subr.bf16.mxu0 %v1141
    %1450 = vmatpush1.bf16.msra.mxu0 %v1140
    %1451 = vmatprep.subr.bf16.mxu0 %v1145
    %1452 = vmatpush1.bf16.msra.mxu0 %v1144
    %1453 = vmatprep.subr.bf16.mxu0 %v1149
    %1454 = vmatpush1.bf16.msra.mxu0 %v1148
    %1455 = vmatprep.subr.bf16.mxu0 %v1153
    %1456 = vmatpush1.bf16.msra.mxu0 %v1152
    %1457 = vmatprep.subr.bf16.mxu0 %v1157
    %1458 = vmatpush1.bf16.msra.mxu0 %v1156
    %1459 = vmatprep.subr.bf16.mxu0 %v1161
    %1460 = vmatpush1.bf16.msra.mxu0 %v1160
    %1461 = vmatprep.subr.bf16.mxu0 %v1165
    %1462 = vmatpush1.bf16.msra.mxu0 %v1164
    %1463 = vmatprep.subr.bf16.mxu0 %v1169
    %1464 = vmatpush1.bf16.msra.mxu0 %v1168
    %1465 = vmatprep.subr.bf16.mxu0 %v1173
    %1466 = vmatpush1.bf16.msra.mxu0 %v1172
    %1467 = vmatprep.subr.bf16.mxu0 %v1177
    %1468 = vmatpush1.bf16.msra.mxu0 %v1176
    %1469 = vmatprep.subr.bf16.mxu0 %v1181
    %1470 = vmatpush1.bf16.msra.mxu0 %v1180
    %1471 = vmatprep.subr.bf16.mxu0 %v1185
    %1472 = vmatpush1.bf16.msra.mxu0 %v1184
    %1473 = vmatprep.subr.bf16.mxu0 %v1189
    %1474 = vmatpush1.bf16.msra.mxu0 %v1188
    %1475 = vmatprep.subr.bf16.mxu0 %v1193
    %1476 = vmatpush1.bf16.msra.mxu0 %v1192
    %1477 = vmatprep.mubr.bf16.mxu0 %v531
    %1478 = vmatmul.mubr.bf16.gmra.mrb[0].mxu0 %v530
    %v1479 = vpop.f32.mrb[0].mxu0
    %v1480 = vadd.f32 %v1439, %v1479
    %v1481 = vpop.f32.mrb[0].mxu0
    %v1482 = vadd.f32 %v1441, %v1481
    %v1483 = vpop.f32.mrb[0].mxu0
    %v1484 = vpop.f32.mrb[0].mxu0
    %1485 = vdwg.mxu0
    %v1486 = vmax.f32 %v1398, 0.0
    %v1487 = vmax.f32 %v1400, 0.0
    %v1488 = vmax.f32 %v1480, 0.0
    %v1489 = vmax.f32 %v1482, 0.0
    %v1490 = vld [vmem:[%s0] sm:$0xff]
    %v1491 = vpack.c.bf16 %v1490, %v1490
    %v1492 = vld [vmem:[%s4] sm:$0xf]
    %v1493 = vld [vmem:[%s4 + $0x4] sm:$0xf]
    %v1494 = vld [vmem:[%s4 + $0x8] sm:$0xf]
    %v1495 = vld [vmem:[%s4 + $0xc] sm:$0xf]
    %v1496 = vpack.c.bf16 %v1486, %v1486
    %v1497 = vpack.c.bf16 %v1487, %v1487
    %v1498 = vpack.c.bf16 %v1488, %v1488
    %v1499 = vpack.c.bf16 %v1489, %v1489
    %v1500 = vld [vmem:[#allocation5] sm:$0xf]
    %v1501 = vld [vmem:[#allocation5 + $0x4] sm:$0xf]
    %v1502 = vld [vmem:[#allocation5 + $0x8] sm:$0xf]
    %v1503 = vld [vmem:[#allocation5 + $0xc] sm:$0xf]
    %v1504 = vld [vmem:[#allocation5 + $0x10] sm:$0xf]
    %v1505 = vld [vmem:[#allocation5 + $0x14] sm:$0xf]
    %v1506 = vld [vmem:[#allocation5 + $0x18] sm:$0xf]
    %v1507 = vld [vmem:[#allocation5 + $0x1c] sm:$0xf]
    %v1508 = vld [vmem:[#allocation5 + $0x20] sm:$0xf]
    %v1509 = vld [vmem:[#allocation5 + $0x24] sm:$0xf]
    %v1510 = vld [vmem:[#allocation5 + $0x28] sm:$0xf]
    %v1511 = vld [vmem:[#allocation5 + $0x2c] sm:$0xf]
    %v1512 = vld [vmem:[#allocation5 + $0x30] sm:$0xf]
    %v1513 = vld [vmem:[#allocation5 + $0x34] sm:$0xf]
    %v1514 = vld [vmem:[#allocation5 + $0x38] sm:$0xf]
    %v1515 = vld [vmem:[#allocation5 + $0x3c] sm:$0xf]
    %v1516 = vld [vmem:[#allocation5 + $0x40] sm:$0xf]
    %v1517 = vld [vmem:[#allocation5 + $0x44] sm:$0xf]
    %v1518 = vld [vmem:[#allocation5 + $0x48] sm:$0xf]
    %v1519 = vld [vmem:[#allocation5 + $0x4c] sm:$0xf]
    %v1520 = vld [vmem:[#allocation5 + $0x50] sm:$0xf]
    %v1521 = vld [vmem:[#allocation5 + $0x54] sm:$0xf]
    %v1522 = vld [vmem:[#allocation5 + $0x58] sm:$0xf]
    %v1523 = vld [vmem:[#allocation5 + $0x5c] sm:$0xf]
    %v1524 = vld [vmem:[#allocation5 + $0x60] sm:$0xf]
    %v1525 = vld [vmem:[#allocation5 + $0x64] sm:$0xf]
    %v1526 = vld [vmem:[#allocation5 + $0x68] sm:$0xf]
    %v1527 = vld [vmem:[#allocation5 + $0x6c] sm:$0xf]
    %v1528 = vld [vmem:[#allocation5 + $0x70] sm:$0xf]
    %v1529 = vld [vmem:[#allocation5 + $0x74] sm:$0xf]
    %v1530 = vld [vmem:[#allocation5 + $0x78] sm:$0xf]
    %v1531 = vld [vmem:[#allocation5 + $0x7c] sm:$0xf]
    %v1532 = vld [vmem:[#allocation5 + $0x80] sm:$0xf]
    %v1533 = vld [vmem:[#allocation5 + $0x84] sm:$0xf]
    %v1534 = vld [vmem:[#allocation5 + $0x88] sm:$0xf]
    %v1535 = vld [vmem:[#allocation5 + $0x8c] sm:$0xf]
    %v1536 = vld [vmem:[#allocation5 + $0x90] sm:$0xf]
    %v1537 = vld [vmem:[#allocation5 + $0x94] sm:$0xf]
    %v1538 = vld [vmem:[#allocation5 + $0x98] sm:$0xf]
    %v1539 = vld [vmem:[#allocation5 + $0x9c] sm:$0xf]
    %v1540 = vld [vmem:[#allocation5 + $0xa0] sm:$0xf]
    %v1541 = vld [vmem:[#allocation5 + $0xa4] sm:$0xf]
    %v1542 = vld [vmem:[#allocation5 + $0xa8] sm:$0xf]
    %v1543 = vld [vmem:[#allocation5 + $0xac] sm:$0xf]
    %v1544 = vld [vmem:[#allocation5 + $0xb0] sm:$0xf]
    %v1545 = vld [vmem:[#allocation5 + $0xb4] sm:$0xf]
    %v1546 = vld [vmem:[#allocation5 + $0xb8] sm:$0xf]
    %v1547 = vld [vmem:[#allocation5 + $0xbc] sm:$0xf]
    %v1548 = vld [vmem:[#allocation5 + $0xc0] sm:$0xf]
    %v1549 = vld [vmem:[#allocation5 + $0xc4] sm:$0xf]
    %v1550 = vld [vmem:[#allocation5 + $0xc8] sm:$0xf]
    %v1551 = vld [vmem:[#allocation5 + $0xcc] sm:$0xf]
    %v1552 = vld [vmem:[#allocation5 + $0xd0] sm:$0xf]
    %v1553 = vld [vmem:[#allocation5 + $0xd4] sm:$0xf]
    %v1554 = vld [vmem:[#allocation5 + $0xd8] sm:$0xf]
    %v1555 = vld [vmem:[#allocation5 + $0xdc] sm:$0xf]
    %v1556 = vld [vmem:[#allocation5 + $0xe0] sm:$0xf]
    %v1557 = vld [vmem:[#allocation5 + $0xe4] sm:$0xf]
    %v1558 = vld [vmem:[#allocation5 + $0xe8] sm:$0xf]
    %v1559 = vld [vmem:[#allocation5 + $0xec] sm:$0xf]
    %v1560 = vld [vmem:[#allocation5 + $0xf0] sm:$0xf]
    %v1561 = vld [vmem:[#allocation5 + $0xf4] sm:$0xf]
    %v1562 = vld [vmem:[#allocation5 + $0xf8] sm:$0xf]
    %v1563 = vld [vmem:[#allocation5 + $0xfc] sm:$0xf]
    %v1628 = vunpack.c.l.b16 %v1500
    %v1629 = vunpack.c.l.b16 %v1501
    %v1630 = vunpack.c.l.b16 %v1502
    %v1631 = vunpack.c.l.b16 %v1503
    %v1632 = vunpack.c.l.b16 %v1504
    %v1633 = vunpack.c.l.b16 %v1505
    %v1634 = vunpack.c.l.b16 %v1506
    %v1635 = vunpack.c.l.b16 %v1507
    %v1636 = vunpack.c.l.b16 %v1508
    %v1637 = vunpack.c.l.b16 %v1509
    %v1638 = vunpack.c.l.b16 %v1510
    %v1639 = vunpack.c.l.b16 %v1511
    %v1640 = vunpack.c.l.b16 %v1512
    %v1641 = vunpack.c.l.b16 %v1513
    %v1642 = vunpack.c.l.b16 %v1514
    %v1643 = vunpack.c.l.b16 %v1515
    %v1644 = vunpack.c.l.b16 %v1516
    %v1645 = vunpack.c.l.b16 %v1517
    %v1646 = vunpack.c.l.b16 %v1518
    %v1647 = vunpack.c.l.b16 %v1519
    %v1648 = vunpack.c.l.b16 %v1520
    %v1649 = vunpack.c.l.b16 %v1521
    %v1650 = vunpack.c.l.b16 %v1522
    %v1651 = vunpack.c.l.b16 %v1523
    %v1652 = vunpack.c.l.b16 %v1524
    %v1653 = vunpack.c.l.b16 %v1525
    %v1654 = vunpack.c.l.b16 %v1526
    %v1655 = vunpack.c.l.b16 %v1527
    %v1656 = vunpack.c.l.b16 %v1528
    %v1657 = vunpack.c.l.b16 %v1529
    %v1658 = vunpack.c.l.b16 %v1530
    %v1659 = vunpack.c.l.b16 %v1531
    %v1660 = vunpack.c.l.b16 %v1532
    %v1661 = vunpack.c.l.b16 %v1533
    %v1662 = vunpack.c.l.b16 %v1534
    %v1663 = vunpack.c.l.b16 %v1535
    %v1664 = vunpack.c.l.b16 %v1536
    %v1665 = vunpack.c.l.b16 %v1537
    %v1666 = vunpack.c.l.b16 %v1538
    %v1667 = vunpack.c.l.b16 %v1539
    %v1668 = vunpack.c.l.b16 %v1540
    %v1669 = vunpack.c.l.b16 %v1541
    %v1670 = vunpack.c.l.b16 %v1542
    %v1671 = vunpack.c.l.b16 %v1543
    %v1672 = vunpack.c.l.b16 %v1544
    %v1673 = vunpack.c.l.b16 %v1545
    %v1674 = vunpack.c.l.b16 %v1546
    %v1675 = vunpack.c.l.b16 %v1547
    %v1676 = vunpack.c.l.b16 %v1548
    %v1677 = vunpack.c.l.b16 %v1549
    %v1678 = vunpack.c.l.b16 %v1550
    %v1679 = vunpack.c.l.b16 %v1551
    %v1680 = vunpack.c.l.b16 %v1552
    %v1681 = vunpack.c.l.b16 %v1553
    %v1682 = vunpack.c.l.b16 %v1554
    %v1683 = vunpack.c.l.b16 %v1555
    %v1684 = vunpack.c.l.b16 %v1556
    %v1685 = vunpack.c.l.b16 %v1557
    %v1686 = vunpack.c.l.b16 %v1558
    %v1687 = vunpack.c.l.b16 %v1559
    %v1688 = vunpack.c.l.b16 %v1560
    %v1689 = vunpack.c.l.b16 %v1561
    %v1690 = vunpack.c.l.b16 %v1562
    %v1691 = vunpack.c.l.b16 %v1563
    %v1692 = vpack.c.b16 %v1629, %v1628
    %v1693 = vpack.c.b16 %v1631, %v1630
    %v1694 = vpack.c.b16 %v1633, %v1632
    %v1695 = vpack.c.b16 %v1635, %v1634
    %v1696 = vpack.c.b16 %v1637, %v1636
    %v1697 = vpack.c.b16 %v1639, %v1638
    %v1698 = vpack.c.b16 %v1641, %v1640
    %v1699 = vpack.c.b16 %v1643, %v1642
    %v1700 = vpack.c.b16 %v1645, %v1644
    %v1701 = vpack.c.b16 %v1647, %v1646
    %v1702 = vpack.c.b16 %v1649, %v1648
    %v1703 = vpack.c.b16 %v1651, %v1650
    %v1704 = vpack.c.b16 %v1653, %v1652
    %v1705 = vpack.c.b16 %v1655, %v1654
    %v1706 = vpack.c.b16 %v1657, %v1656
    %v1707 = vpack.c.b16 %v1659, %v1658
    %v1708 = vpack.c.b16 %v1661, %v1660
    %v1709 = vpack.c.b16 %v1663, %v1662
    %v1710 = vpack.c.b16 %v1665, %v1664
    %v1711 = vpack.c.b16 %v1667, %v1666
    %v1712 = vpack.c.b16 %v1669, %v1668
    %v1713 = vpack.c.b16 %v1671, %v1670
    %v1714 = vpack.c.b16 %v1673, %v1672
    %v1715 = vpack.c.b16 %v1675, %v1674
    %v1716 = vpack.c.b16 %v1677, %v1676
    %v1717 = vpack.c.b16 %v1679, %v1678
    %v1718 = vpack.c.b16 %v1681, %v1680
    %v1719 = vpack.c.b16 %v1683, %v1682
    %v1720 = vpack.c.b16 %v1685, %v1684
    %v1721 = vpack.c.b16 %v1687, %v1686
    %v1722 = vpack.c.b16 %v1689, %v1688
    %v1723 = vpack.c.b16 %v1691, %v1690
    %1756 = vmatprep.subr.bf16.mxu0 0
    %1757 = vmatpush1.bf16.msra.mxu0 %v1692
    %1758 = vmatprep.subr.bf16.mxu0 0
    %1759 = vmatpush1.bf16.msra.mxu0 %v1693
    %1760 = vmatprep.subr.bf16.mxu0 0
    %1761 = vmatpush1.bf16.msra.mxu0 %v1694
    %1762 = vmatprep.subr.bf16.mxu0 0
    %1763 = vmatpush1.bf16.msra.mxu0 %v1695
    %1764 = vmatprep.subr.bf16.mxu0 0
    %1765 = vmatpush1.bf16.msra.mxu0 %v1696
    %1766 = vmatprep.subr.bf16.mxu0 0
    %1767 = vmatpush1.bf16.msra.mxu0 %v1697
    %1768 = vmatprep.subr.bf16.mxu0 0
    %1769 = vmatpush1.bf16.msra.mxu0 %v1698
    %1770 = vmatprep.subr.bf16.mxu0 0
    %1771 = vmatpush1.bf16.msra.mxu0 %v1699
    %1772 = vmatprep.subr.bf16.mxu0 0
    %1773 = vmatpush1.bf16.msra.mxu0 %v1700
    %1774 = vmatprep.subr.bf16.mxu0 0
    %1775 = vmatpush1.bf16.msra.mxu0 %v1701
    %1776 = vmatprep.subr.bf16.mxu0 0
    %1777 = vmatpush1.bf16.msra.mxu0 %v1702
    %1778 = vmatprep.subr.bf16.mxu0 0
    %1779 = vmatpush1.bf16.msra.mxu0 %v1703
    %1780 = vmatprep.subr.bf16.mxu0 0
    %1781 = vmatpush1.bf16.msra.mxu0 %v1704
    %1782 = vmatprep.subr.bf16.mxu0 0
    %1783 = vmatpush1.bf16.msra.mxu0 %v1705
    %1784 = vmatprep.subr.bf16.mxu0 0
    %1785 = vmatpush1.bf16.msra.mxu0 %v1706
    %1786 = vmatprep.subr.bf16.mxu0 0
    %1787 = vmatpush1.bf16.msra.mxu0 %v1707
    %1788 = vmatprep.mubr.bf16.mxu0 %v1497
    %1789 = vmatmul.mubr.bf16.gmra.mrb[0].mxu0 %v1496
    %v1790 = vpop.f32.mrb[0].mxu0
    %v1791 = vadd.f32 0.0, %v1790
    %v1792 = vpop.f32.mrb[0].mxu0
    %v1793 = vpop.f32.mrb[0].mxu0
    %v1794 = vpop.f32.mrb[0].mxu0
    %1795 = vdwg.mxu0
    %1796 = vmatprep.subr.bf16.mxu0 0
    %1797 = vmatpush1.bf16.msra.mxu0 %v1708
    %1798 = vmatprep.subr.bf16.mxu0 0
    %1799 = vmatpush1.bf16.msra.mxu0 %v1709
    %1800 = vmatprep.subr.bf16.mxu0 0
    %1801 = vmatpush1.bf16.msra.mxu0 %v1710
    %1802 = vmatprep.subr.bf16.mxu0 0
    %1803 = vmatpush1.bf16.msra.mxu0 %v1711
    %1804 = vmatprep.subr.bf16.mxu0 0
    %1805 = vmatpush1.bf16.msra.mxu0 %v1712
    %1806 = vmatprep.subr.bf16.mxu0 0
    %1807 = vmatpush1.bf16.msra.mxu0 %v1713
    %1808 = vmatprep.subr.bf16.mxu0 0
    %1809 = vmatpush1.bf16.msra.mxu0 %v1714
    %1810 = vmatprep.subr.bf16.mxu0 0
    %1811 = vmatpush1.bf16.msra.mxu0 %v1715
    %1812 = vmatprep.subr.bf16.mxu0 0
    %1813 = vmatpush1.bf16.msra.mxu0 %v1716
    %1814 = vmatprep.subr.bf16.mxu0 0
    %1815 = vmatpush1.bf16.msra.mxu0 %v1717
    %1816 = vmatprep.subr.bf16.mxu0 0
    %1817 = vmatpush1.bf16.msra.mxu0 %v1718
    %1818 = vmatprep.subr.bf16.mxu0 0
    %1819 = vmatpush1.bf16.msra.mxu0 %v1719
    %1820 = vmatprep.subr.bf16.mxu0 0
    %1821 = vmatpush1.bf16.msra.mxu0 %v1720
    %1822 = vmatprep.subr.bf16.mxu0 0
    %1823 = vmatpush1.bf16.msra.mxu0 %v1721
    %1824 = vmatprep.subr.bf16.mxu0 0
    %1825 = vmatpush1.bf16.msra.mxu0 %v1722
    %1826 = vmatprep.subr.bf16.mxu0 0
    %1827 = vmatpush1.bf16.msra.mxu0 %v1723
    %1828 = vmatprep.mubr.bf16.mxu0 %v1499
    %1829 = vmatmul.mubr.bf16.gmra.mrb[0].mxu0 %v1498
    %v1830 = vpop.f32.mrb[0].mxu0
    %v1831 = vadd.f32 %v1791, %v1830
    %v1832 = vpop.f32.mrb[0].mxu0
    %v1833 = vpop.f32.mrb[0].mxu0
    %v1834 = vpop.f32.mrb[0].mxu0
    %1835 = vdwg.mxu0
    %v1840 = vunpack.c.l.b16 %v1492
    %v1841 = vunpack.c.l.b16 %v1493
    %v1842 = vunpack.c.l.b16 %v1494
    %v1843 = vunpack.c.l.b16 %v1495
    %v1844 = vpack.c.b16 %v1841, %v1840
    %v1845 = vpack.c.b16 %v1843, %v1842
    %vm1848 = vcmask 261120
    %v1850 = vsel %vm1848, %v1491, 0
    %1852 = vmatprep.subr.bf16.mxu0 0
    %1853 = vmatpush1.bf16.msra.mxu0 %v1844
    %1854 = vmatprep.subr.bf16.mxu0 0
    %1855 = vmatpush1.bf16.msra.mxu0 %v1845
    %1856 = vmatprep.subr.bf16.mxu0 0
    %1857 = vmatpush1.bf16.msra.mxu0 0
    %1858 = vmatprep.subr.bf16.mxu0 0
    %1859 = vmatpush1.bf16.msra.mxu0 0
    %1860 = vmatprep.subr.bf16.mxu0 0
    %1861 = vmatpush1.bf16.msra.mxu0 0
    %1862 = vmatprep.subr.bf16.mxu0 0
    %1863 = vmatpush1.bf16.msra.mxu0 0
    %1864 = vmatprep.subr.bf16.mxu0 0
    %1865 = vmatpush1.bf16.msra.mxu0 0
    %1866 = vmatprep.subr.bf16.mxu0 0
    %1867 = vmatpush1.bf16.msra.mxu0 0
    %1868 = vmatprep.subr.bf16.mxu0 0
    %1869 = vmatpush1.bf16.msra.mxu0 0
    %1870 = vmatprep.subr.bf16.mxu0 0
    %1871 = vmatpush1.bf16.msra.mxu0 0
    %1872 = vmatprep.subr.bf16.mxu0 0
    %1873 = vmatpush1.bf16.msra.mxu0 0
    %1874 = vmatprep.subr.bf16.mxu0 0
    %1875 = vmatpush1.bf16.msra.mxu0 0
    %1876 = vmatprep.subr.bf16.mxu0 0
    %1877 = vmatpush1.bf16.msra.mxu0 0
    %1878 = vmatprep.subr.bf16.mxu0 0
    %1879 = vmatpush1.bf16.msra.mxu0 0
    %1880 = vmatprep.subr.bf16.mxu0 0
    %1881 = vmatpush1.bf16.msra.mxu0 0
    %1882 = vmatprep.subr.bf16.mxu0 0
    %1883 = vmatpush1.bf16.msra.mxu0 0
    %1884 = vmatprep.mubr.bf16.mxu0 0
    %1885 = vmatmul.mubr.bf16.gmra.mrb[0].mxu0 %v1850
    %v1886 = vpop.f32.mrb[0].mxu0
    %v1887 = vadd.f32 %v1831, %v1886
    %v1888 = vpop.f32.mrb[0].mxu0
    %v1889 = vpop.f32.mrb[0].mxu0
    %v1890 = vpop.f32.mrb[0].mxu0
    %1891 = vdwg.mxu0
    %v1892 = vld [vmem:[%s6] sm:$0x1]
    %v1894 = vlaneseq
    %v1895 = vshrl.u32 %v1894, 7
    %v1896 = vsub.s32 0, %v1895
    %v1897 = vrot.slane %v1892, %v1896
    %v1899 = vadd.f32 %v1887, %v1897
    %v1900 = vmax.f32 %v1899, 0.0
    %v1901 = vpack.c.bf16 %v1900, %v1900
    %v1902 = vld [vmem:[#allocation7] sm:$0xf]
    %v1903 = vld [vmem:[#allocation7 + $0x4] sm:$0xf]
    %v1904 = vld [vmem:[#allocation7 + $0x8] sm:$0xf]
    %v1905 = vld [vmem:[#allocation7 + $0xc] sm:$0xf]
    %v1906 = vld [vmem:[#allocation7 + $0x10] sm:$0xf]
    %v1907 = vld [vmem:[#allocation7 + $0x14] sm:$0xf]
    %v1908 = vld [vmem:[#allocation7 + $0x18] sm:$0xf]
    %v1909 = vld [vmem:[#allocation7 + $0x1c] sm:$0xf]
    %v1910 = vld [vmem:[#allocation7 + $0x20] sm:$0xf]
    %v1911 = vld [vmem:[#allocation7 + $0x24] sm:$0xf]
    %v1912 = vld [vmem:[#allocation7 + $0x28] sm:$0xf]
    %v1913 = vld [vmem:[#allocation7 + $0x2c] sm:$0xf]
    %v1914 = vld [vmem:[#allocation7 + $0x30] sm:$0xf]
    %v1915 = vld [vmem:[#allocation7 + $0x34] sm:$0xf]
    %v1916 = vld [vmem:[#allocation7 + $0x38] sm:$0xf]
    %v1917 = vld [vmem:[#allocation7 + $0x3c] sm:$0xf]
    %v1918 = vld [vmem:[%s8] sm:$0x1]
    %v1920 = vlaneseq
    %v1921 = vshrl.u32 %v1920, 7
    %v1922 = vsub.s32 0, %v1921
    %v1923 = vrot.slane %v1918, %v1922
    %v1941 = vunpack.c.l.b16 %v1902
    %v1942 = vunpack.c.l.b16 %v1903
    %v1943 = vunpack.c.l.b16 %v1904
    %v1944 = vunpack.c.l.b16 %v1905
    %v1945 = vunpack.c.l.b16 %v1906
    %v1946 = vunpack.c.l.b16 %v1907
    %v1947 = vunpack.c.l.b16 %v1908
    %v1948 = vunpack.c.l.b16 %v1909
    %v1949 = vunpack.c.l.b16 %v1910
    %v1950 = vunpack.c.l.b16 %v1911
    %v1951 = vunpack.c.l.b16 %v1912
    %v1952 = vunpack.c.l.b16 %v1913
    %v1953 = vunpack.c.l.b16 %v1914
    %v1954 = vunpack.c.l.b16 %v1915
    %v1955 = vunpack.c.l.b16 %v1916
    %v1956 = vunpack.c.l.b16 %v1917
    %v1957 = vpack.c.b16 %v1942, %v1941
    %v1958 = vpack.c.b16 %v1944, %v1943
    %v1959 = vpack.c.b16 %v1946, %v1945
    %v1960 = vpack.c.b16 %v1948, %v1947
    %v1961 = vpack.c.b16 %v1950, %v1949
    %v1962 = vpack.c.b16 %v1952, %v1951
    %v1963 = vpack.c.b16 %v1954, %v1953
    %v1964 = vpack.c.b16 %v1956, %v1955
    %1973 = vmatprep.subr.bf16.mxu0 0
    %1974 = vmatpush1.bf16.msra.mxu0 %v1957
    %1975 = vmatprep.subr.bf16.mxu0 0
    %1976 = vmatpush1.bf16.msra.mxu0 %v1958
    %1977 = vmatprep.subr.bf16.mxu0 0
    %1978 = vmatpush1.bf16.msra.mxu0 %v1959
    %1979 = vmatprep.subr.bf16.mxu0 0
    %1980 = vmatpush1.bf16.msra.mxu0 %v1960
    %1981 = vmatprep.subr.bf16.mxu0 0
    %1982 = vmatpush1.bf16.msra.mxu0 %v1961
    %1983 = vmatprep.subr.bf16.mxu0 0
    %1984 = vmatpush1.bf16.msra.mxu0 %v1962
    %1985 = vmatprep.subr.bf16.mxu0 0
    %1986 = vmatpush1.bf16.msra.mxu0 %v1963
    %1987 = vmatprep.subr.bf16.mxu0 0
    %1988 = vmatpush1.bf16.msra.mxu0 %v1964
    %1989 = vmatprep.subr.bf16.mxu0 0
    %1990 = vmatpush1.bf16.msra.mxu0 0
    %1991 = vmatprep.subr.bf16.mxu0 0
    %1992 = vmatpush1.bf16.msra.mxu0 0
    %1993 = vmatprep.subr.bf16.mxu0 0
    %1994 = vmatpush1.bf16.msra.mxu0 0
    %1995 = vmatprep.subr.bf16.mxu0 0
    %1996 = vmatpush1.bf16.msra.mxu0 0
    %1997 = vmatprep.subr.bf16.mxu0 0
    %1998 = vmatpush1.bf16.msra.mxu0 0
    %1999 = vmatprep.subr.bf16.mxu0 0
    %2000 = vmatpush1.bf16.msra.mxu0 0
    %2001 = vmatprep.subr.bf16.mxu0 0
    %2002 = vmatpush1.bf16.msra.mxu0 0
    %2003 = vmatprep.subr.bf16.mxu0 0
    %2004 = vmatpush1.bf16.msra.mxu0 0
    %2005 = vmatprep.mubr.bf16.mxu0 0
    %2006 = vmatmul.mubr.bf16.gmra.mrb[0].mxu0 %v1901
    %v2007 = vpop.f32.mrb[0].mxu0
    %v2008 = vadd.f32 %v1923, %v2007
    %v2009 = vpop.f32.mrb[0].mxu0
    %v2010 = vpop.f32.mrb[0].mxu0
    %v2011 = vpop.f32.mrb[0].mxu0
    %2012 = vdwg.mxu0
    %v2013 = vmax.f32 %v2008, 0.0
    %v2014 = vpack.c.bf16 %v2013, %v2013
    %v2015 = vld [vmem:[#allocation8] sm:$0xf]
    %v2016 = vld [vmem:[#allocation8 + $0x4] sm:$0xf]
    %v2017 = vld [vmem:[#allocation8 + $0x8] sm:$0xf]
    %v2018 = vld [vmem:[#allocation8 + $0xc] sm:$0xf]
    %v2019 = vld [vmem:[#allocation8 + $0x10] sm:$0xf]
    %v2020 = vld [vmem:[#allocation8 + $0x14] sm:$0xf]
    %v2021 = vld [vmem:[#allocation8 + $0x18] sm:$0xf]
    %v2022 = vld [vmem:[#allocation8 + $0x1c] sm:$0xf]
    %v2023 = vld [vmem:[#allocation8 + $0x20] sm:$0xf]
    %v2024 = vld [vmem:[#allocation8 + $0x24] sm:$0xf]
    %v2025 = vld [vmem:[#allocation8 + $0x28] sm:$0xf]
    %v2026 = vld [vmem:[#allocation8 + $0x2c] sm:$0xf]
    %v2027 = vld [vmem:[#allocation8 + $0x30] sm:$0xf]
    %v2028 = vld [vmem:[#allocation8 + $0x34] sm:$0xf]
    %v2029 = vld [vmem:[#allocation8 + $0x38] sm:$0xf]
    %v2030 = vld [vmem:[#allocation8 + $0x3c] sm:$0xf]
    %v2031 = vld [vmem:[%s10] sm:$0x1]
    %v2033 = vlaneseq
    %v2034 = vshrl.u32 %v2033, 7
    %v2035 = vsub.s32 0, %v2034
    %v2036 = vrot.slane %v2031, %v2035
    %v2054 = vunpack.c.l.b16 %v2015
    %v2055 = vunpack.c.l.b16 %v2016
    %v2056 = vunpack.c.l.b16 %v2017
    %v2057 = vunpack.c.l.b16 %v2018
    %v2058 = vunpack.c.l.b16 %v2019
    %v2059 = vunpack.c.l.b16 %v2020
    %v2060 = vunpack.c.l.b16 %v2021
    %v2061 = vunpack.c.l.b16 %v2022
    %v2062 = vunpack.c.l.b16 %v2023
    %v2063 = vunpack.c.l.b16 %v2024
    %v2064 = vunpack.c.l.b16 %v2025
    %v2065 = vunpack.c.l.b16 %v2026
    %v2066 = vunpack.c.l.b16 %v2027
    %v2067 = vunpack.c.l.b16 %v2028
    %v2068 = vunpack.c.l.b16 %v2029
    %v2069 = vunpack.c.l.b16 %v2030
    %v2070 = vpack.c.b16 %v2055, %v2054
    %v2071 = vpack.c.b16 %v2057, %v2056
    %v2072 = vpack.c.b16 %v2059, %v2058
    %v2073 = vpack.c.b16 %v2061, %v2060
    %v2074 = vpack.c.b16 %v2063, %v2062
    %v2075 = vpack.c.b16 %v2065, %v2064
    %v2076 = vpack.c.b16 %v2067, %v2066
    %v2077 = vpack.c.b16 %v2069, %v2068
    %2086 = vmatprep.subr.bf16.mxu0 0
    %2087 = vmatpush1.bf16.msra.mxu0 %v2070
    %2088 = vmatprep.subr.bf16.mxu0 0
    %2089 = vmatpush1.bf16.msra.mxu0 %v2071
    %2090 = vmatprep.subr.bf16.mxu0 0
    %2091 = vmatpush1.bf16.msra.mxu0 %v2072
    %2092 = vmatprep.subr.bf16.mxu0 0
    %2093 = vmatpush1.bf16.msra.mxu0 %v2073
    %2094 = vmatprep.subr.bf16.mxu0 0
    %2095 = vmatpush1.bf16.msra.mxu0 %v2074
    %2096 = vmatprep.subr.bf16.mxu0 0
    %2097 = vmatpush1.bf16.msra.mxu0 %v2075
    %2098 = vmatprep.subr.bf16.mxu0 0
    %2099 = vmatpush1.bf16.msra.mxu0 %v2076
    %2100 = vmatprep.subr.bf16.mxu0 0
    %2101 = vmatpush1.bf16.msra.mxu0 %v2077
    %2102 = vmatprep.subr.bf16.mxu0 0
    %2103 = vmatpush1.bf16.msra.mxu0 0
    %2104 = vmatprep.subr.bf16.mxu0 0
    %2105 = vmatpush1.bf16.msra.mxu0 0
    %2106 = vmatprep.subr.bf16.mxu0 0
    %2107 = vmatpush1.bf16.msra.mxu0 0
    %2108 = vmatprep.subr.bf16.mxu0 0
    %2109 = vmatpush1.bf16.msra.mxu0 0
    %2110 = vmatprep.subr.bf16.mxu0 0
    %2111 = vmatpush1.bf16.msra.mxu0 0
    %2112 = vmatprep.subr.bf16.mxu0 0
    %2113 = vmatpush1.bf16.msra.mxu0 0
    %2114 = vmatprep.subr.bf16.mxu0 0
    %2115 = vmatpush1.bf16.msra.mxu0 0
    %2116 = vmatprep.subr.bf16.mxu0 0
    %2117 = vmatpush1.bf16.msra.mxu0 0
    %2118 = vmatprep.mubr.bf16.mxu0 0
    %2119 = vmatmul.mubr.bf16.gmra.mrb[0].mxu0 %v2014
    %v2120 = vpop.f32.mrb[0].mxu0
    %v2121 = vadd.f32 %v2036, %v2120
    %v2122 = vpop.f32.mrb[0].mxu0
    %v2123 = vpop.f32.mrb[0].mxu0
    %v2124 = vpop.f32.mrb[0].mxu0
    %2125 = vdwg.mxu0
    %2126 = vst [vmem:[#allocation10] sm:$0xff] %v2121
    // Predicated region
    $region62: #{diff_unet_forward.1} parent=1 // pred_check
      _
    $region63: #{diff_unet_forward.1} parent=1 // pred_check_branch
      %2128 = sbr.rel (0) target = $region65
    $region64: #{diff_unet_forward.1} parent=1 // pred_region
      %s2130 = ssub.s32 128, 128
      %2131 = vsyncadd [#allocation4], %s2130
      %s2133 = sshll.u32 [#allocation10], 4
      %s2134 = int_to_ptr.vmem [resolvable:$true] %s2133
      %2136 = dma.vmem_to_hbm [thread:$0]  %s2134, 128, %s11, [#allocation4]
    $region65: #{diff_unet_forward.1} parent=1 // pred_fallthru
      _
    // Predicated region
    $region66: #{diff_unet_forward.1} parent=1 // pred_check
      _
    $region67: #{diff_unet_forward.1} parent=1 // pred_check_branch
      %2138 = sbr.rel (0) target = $region69
    $region68: #{diff_unet_forward.1} parent=1 // pred_region
      %2139 = dma.done [#allocation4], 128
    $region69: #{diff_unet_forward.1} parent=1 // pred_fallthru
      _
    %2140 = vsyncpa [#allocation3], 1
    %2141 = vsyncpa [#allocation6], 1
    %2142 = vsyncpa [#allocation9], 1
    %2143 = vsyncpa [#allocation4], 1

</llo_original>
